<compile_context>
chip_gen: v7x
topology: tpu7x:2x2x1
jax: 0.10.0
libtpu: 0.0.40
codegen_flags: <defaults>
</compile_context>

<pallas_src>
import functools

import jax
import jax.numpy as jnp
from jax import lax
from jax.experimental import pallas as pl
from jax.experimental.pallas import tpu as pltpu

_HAS_BUFFERED = hasattr(pl, "Buffered")


def _sublane_multiple(dtype):
    # Sub-32-bit dtypes pack along sublanes: f32 -> 8, bf16 -> 16, int8/fp8 -> 32.
    bits = jnp.dtype(dtype).itemsize * 8
    return max(8, 256 // bits)


def _vmem_capacity_bytes():
    try:
        return int(pltpu.get_tpu_info().vmem_capacity_bytes)
    except Exception:  # pragma: no cover - fall back to the smallest part (v7x)
        return 64 * 2 ** 20


def _encoder_kernel(x_ref, wh_ref, bh_ref, wo_ref, bo_ref, out_ref, *, layer_num):
    """One (batch, seq-tile) grid step.

    x_ref:   (1, TS, H)     input rows (model dtype; bf16 feeds the MXU directly)
    wh_ref:  (H, H)         hidden weight, pre-transposed to (in, out)
    bh_ref:  (1, H)         hidden bias
    wo_ref:  (H, O)         output weight, pre-transposed to (in, out)
    bo_ref:  (1, O)         output bias
    out_ref: (1, 2, TS, O)  slot 0 = out_layer(inputs), slot 1 = out_layer(x)
    """
    compute_dtype = x_ref.dtype            # keep the MXU on the native-dtype path
    x_in = x_ref[0]                         # (TS, H), model dtype (no f32 upcast)
    wh = wh_ref[...]
    wo = wo_ref[...]
    ts, h_dim = x_in.shape
    o_dim = wo.shape[1]

    # Hoist the (f32) bias broadcasts out of the layer loop (JAX does not CSE
    # broadcast_in_dim; an unrolled loop would otherwise emit one per layer).
    bh_b = jnp.broadcast_to(bh_ref[...].astype(jnp.float32), (ts, h_dim))
    bo_b = jnp.broadcast_to(bo_ref[...].astype(jnp.float32), (2 * ts, o_dim))

    def layer(v):
        # bf16 (or f32) in, f32 accumulate on the MXU, f32 bias+ReLU, cast back.
        h = jnp.dot(v, wh, preferred_element_type=jnp.float32) + bh_b
        return jnp.maximum(h, 0.0).astype(compute_dtype)

    if layer_num <= 8:
        # Short stacks: full static unroll (LLO scheduler sees everything).
        x = x_in
        for _ in range(layer_num):
            x = layer(x)
    else:
        # Deep stacks: keep the loop visible; small unroll preserves pipelining.
        x = lax.fori_loop(0, layer_num, lambda _, v: layer(v), x_in, unroll=2)

    # Fuse the two out_layer projections into ONE MXU pass over (2*TS, H):
    # a single RHS push / systolic drain for the narrow-N matmul instead of two.
    stacked = jnp.concatenate([x_in, x], axis=0)                     # (2*TS, H)
    out = jnp.dot(stacked, wo, preferred_element_type=jnp.float32) + bo_b
    out_ref[0, 0] = out[:ts].astype(out_ref.dtype)                   # out_layer(inputs)
    out_ref[0, 1] = out[ts:].astype(out_ref.dtype)                   # out_layer(x)


def prepare_encoder_params(w_hidden, b_hidden, w_out, b_out):
    """One-time parameter prep, hoisted out of the per-call hot path.

    nn.Linear stores (out, in); pre-transpose once to (in, out) and make the
    biases 2-D so the kernel sees lane-major rows.
    """
    w_hidden = jnp.asarray(w_hidden)
    w_out = jnp.asarray(w_out)
    h_dim = w_hidden.shape[0]
    o_dim = w_out.shape[0]
    return (w_hidden.T,
            jnp.asarray(b_hidden).reshape(1, h_dim),
            w_out.T,
            jnp.asarray(b_out).reshape(1, o_dim))


def encoder_apply(inputs, params, layer_num, *, tile_seq=None):
    """inputs: (B, S, H); params from prepare_encoder_params.
    Returns (B, 2*S, out_dim), matching the PyTorch module."""
    wh_t, bh2d, wo_t, bo2d = params
    B, S, H = inputs.shape
    O = wo_t.shape[1]
    dtype = inputs.dtype
    itemsize = jnp.dtype(dtype).itemsize

    # --- VMEM budget keyed off the part --------------------------------------
    vmem_cap = _vmem_capacity_bytes()
    if vmem_cap >= 96 * 2 ** 20:       # v5e / v6e: 128 MiB VMEM per core
        vmem_budget, tile_cap, vmem_limit_cap = 64 * 2 ** 20, 1024, 96 * 2 ** 20
    else:                              # v7x: 64 MiB per TensorCore
        vmem_budget, tile_cap, vmem_limit_cap = 32 * 2 ** 20, 512, 48 * 2 ** 20

    g = _sublane_multiple(dtype)       # dtype-aware sublane granularity
    s_aligned = ((S + g - 1) // g) * g

    # Weights are single-buffered (constant index map) when pl.Buffered exists.
    weight_copies = 1 if _HAS_BUFFERED else 2
    weight_bytes = (H * H + H + H * O + O) * itemsize * weight_copies

    # Per sequence row: double-buffered I/O tiles (model dtype) plus in-kernel
    # temporaries (f32 dot results & bias broadcasts, stacked [x_in; x] copy).
    per_row_bytes = (2 * H + 2 * 2 * O) * itemsize          # pipelined in/out
    per_row_bytes += H * (8 + 4 * itemsize) + 16 * O        # f32 temps + copies

    # --- tile selection -------------------------------------------------------
    if tile_seq is None:
        avail = max(vmem_budget - weight_bytes, g * per_row_bytes)
        tile_seq = int(min(tile_cap, max(g, (avail // per_row_bytes) // g * g)))
    tile_seq = int(min(max(g, (tile_seq // g) * g), s_aligned))

    # v7x has 2 TCs: if batch gives no parallelism, split the sequence instead.
    if B == 1 and s_aligned >= 2 * g:
        tile_seq = min(tile_seq, max(g, (s_aligned // 2) // g * g))

    # Prefer a tile that divides the aligned sequence so s_pad == S whenever S
    # is g-aligned -> the final reshape is a free view (no pad+slice HBM copy).
    if s_aligned % tile_seq != 0:
        for t in range(tile_seq, g - 1, -g):
            if s_aligned % t == 0:
                if 2 * t >= tile_seq:        # don't shrink the tile by >2x
                    tile_seq = t
                break

    s_tiles = (s_aligned + tile_seq - 1) // tile_seq
    s_pad = s_tiles * tile_seq
    x = inputs if s_pad == S else jnp.pad(inputs,
                                          ((0, 0), (0, s_pad - S), (0, 0)))

    vmem_limit = int(min(vmem_limit_cap,
                         max(16 * 2 ** 20,
                             tile_seq * per_row_bytes + weight_bytes + (2 << 20))))

    kernel = functools.partial(_encoder_kernel, layer_num=layer_num)

    def run(single_buffer_weights):
        def const_spec(shape):
            idx = lambda b, s: (0,) * len(shape)
            if single_buffer_weights:
                return pl.BlockSpec(shape, idx, pipeline_mode=pl.Buffered(1))
            return pl.BlockSpec(shape, idx)

        return pl.pallas_call(
            kernel,
            out_shape=jax.ShapeDtypeStruct((B, 2, s_pad, O), dtype),
            grid=(B, s_tiles),
            in_specs=[
                pl.BlockSpec((1, tile_seq, H), lambda b, s: (b, s, 0)),  # inputs
                const_spec((H, H)),                                      # Wh^T
                const_spec((1, H)),                                      # bh
                const_spec((H, O)),                                      # Wo^T
                const_spec((1, O)),                                      # bo
            ],
            out_specs=pl.BlockSpec((1, 2, tile_seq, O),
                                   lambda b, s: (b, 0, s, 0)),
            compiler_params=pltpu.CompilerParams(
                dimension_semantics=("parallel", "parallel"),
                vmem_limit_bytes=vmem_limit),
        )(x, wh_t, bh2d, wo_t, bo2d)

    try:
        out4 = run(_HAS_BUFFERED)
    except Exception:  # pragma: no cover - jax without pipeline_mode support
        if not _HAS_BUFFERED:
            raise
        out4 = run(False)

    # (B, 2, S, O) --contiguous reshape--> (B, 2S, O)  ==  torch.cat(..., axis=1)
    if s_pad != S:
        out4 = out4[:, :, :S, :]
    return out4.reshape(B, 2 * S, O)


def encoder_forward(inputs, w_hidden, b_hidden, w_out, b_out, layer_num,
                    *, tile_seq=None):
    """Convenience wrapper taking raw PyTorch-layout parameters."""
    params = prepare_encoder_params(w_hidden, b_hidden, w_out, b_out)
    return encoder_apply(inputs, params, layer_num, tile_seq=tile_seq)


def _reference_forward(inputs, w_hidden, b_hidden, w_out, b_out, layer_num):
    """Pure-JAX reference mirroring the PyTorch forward exactly."""
    x = inputs
    for _ in range(layer_num):
        x = jnp.maximum(x @ w_hidden.T + b_hidden, 0.0)
    cat = jnp.concatenate([inputs, x], axis=1)
    return cat @ w_out.T + b_out


if __name__ == "__main__":
    # Small, deterministic setup.
    layer_num = 3
    B, S, hidden_dim, out_dim = 2, 8, 32, 16

    key = jax.random.PRNGKey(0)
    k_x, k_wh, k_bh, k_wo, k_bo = jax.random.split(key, 5)

    inputs = jax.random.normal(k_x, (B, S, hidden_dim), dtype=jnp.float32)

    # nn.Linear(hidden_dim, hidden_dim): weight (out, in), bias (out,)
    bound_h = 1.0 / jnp.sqrt(hidden_dim)
    w_hidden = jax.random.uniform(k_wh, (hidden_dim, hidden_dim),
                                  minval=-bound_h, maxval=bound_h,
                                  dtype=jnp.float32)
    b_hidden = jax.random.uniform(k_bh, (hidden_dim,),
                                  minval=-bound_h, maxval=bound_h,
                                  dtype=jnp.float32)

    # nn.Linear(hidden_dim, out_dim)
    w_out = jax.random.uniform(k_wo, (out_dim, hidden_dim),
                               minval=-bound_h, maxval=bound_h,
                               dtype=jnp.float32)
    b_out = jax.random.uniform(k_bo, (out_dim,),
                               minval=-bound_h, maxval=bound_h,
                               dtype=jnp.float32)

    # Parameter prep is done ONCE (hoisted out of the per-call hot path).
    params = prepare_encoder_params(w_hidden, b_hidden, w_out, b_out)

    out = encoder_apply(inputs, params, layer_num)
    out = jax.block_until_ready(out)

    ref = _reference_forward(inputs, w_hidden, b_hidden, w_out, b_out,
                             layer_num)
    assert out.shape == (B, 2 * S, out_dim), out.shape
    assert jnp.allclose(out, ref, atol=1e-5, rtol=1e-5), \
        float(jnp.max(jnp.abs(out - ref)))

    print("KERNEL_OK")
</pallas_src>

<mosaic_0001>
module attributes {stable_mosaic.version = 11 : i64} {
  func.func @_encoder_kernel(%arg0: i32, %arg1: i32, %arg2: memref<1x8x32xf32, #tpu.memory_space<vmem>>, %arg3: memref<32x32xf32, #tpu.memory_space<vmem>>, %arg4: memref<1x32xf32, #tpu.memory_space<vmem>>, %arg5: memref<32x16xf32, #tpu.memory_space<vmem>>, %arg6: memref<1x16xf32, #tpu.memory_space<vmem>>, %arg7: memref<1x2x8x16xf32, #tpu.memory_space<vmem>>) attributes {dimension_semantics = [#tpu.dimension_semantics<parallel>, #tpu.dimension_semantics<parallel>], iteration_bounds = array<i64: 2, 1>, scalar_prefetch = 0 : i64, scratch_operands = 0 : i64, tpu.core_type = #tpu.core_type<tc>, window_params = [{transform_indices = @transform_0, window_bounds = array<i64: 1, 8, 32>}, {pipeline_mode = #tpu.pipeline_mode<synchronous>, transform_indices = @transform_1, window_bounds = array<i64: 32, 32>}, {pipeline_mode = #tpu.pipeline_mode<synchronous>, transform_indices = @transform_2, window_bounds = array<i64: 1, 32>}, {pipeline_mode = #tpu.pipeline_mode<synchronous>, transform_indices = @transform_3, window_bounds = array<i64: 32, 16>}, {pipeline_mode = #tpu.pipeline_mode<synchronous>, transform_indices = @transform_4, window_bounds = array<i64: 1, 16>}, {transform_indices = @transform_5, window_bounds = array<i64: 1, 2, 8, 16>}]} {
    %c0 = arith.constant 0 : index
    %c0_0 = arith.constant 0 : index
    %c0_1 = arith.constant 0 : index
    %0 = vector.load %arg2[%c0, %c0_0, %c0_1] : memref<1x8x32xf32, #tpu.memory_space<vmem>>, vector<1x8x32xf32>
    %1 = vector.shape_cast %0 : vector<1x8x32xf32> to vector<8x32xf32>
    %c0_2 = arith.constant 0 : index
    %c0_3 = arith.constant 0 : index
    %2 = vector.load %arg3[%c0_2, %c0_3] : memref<32x32xf32, #tpu.memory_space<vmem>>, vector<32x32xf32>
    %c0_4 = arith.constant 0 : index
    %c0_5 = arith.constant 0 : index
    %3 = vector.load %arg5[%c0_4, %c0_5] : memref<32x16xf32, #tpu.memory_space<vmem>>, vector<32x16xf32>
    %c0_6 = arith.constant 0 : index
    %c0_7 = arith.constant 0 : index
    %4 = vector.load %arg4[%c0_6, %c0_7] : memref<1x32xf32, #tpu.memory_space<vmem>>, vector<1x32xf32>
    %5 = vector.shape_cast %4 : vector<1x32xf32> to vector<1x32xf32>
    %6 = vector.broadcast %5 : vector<1x32xf32> to vector<8x32xf32>
    %c0_8 = arith.constant 0 : index
    %c0_9 = arith.constant 0 : index
    %7 = vector.load %arg6[%c0_8, %c0_9] : memref<1x16xf32, #tpu.memory_space<vmem>>, vector<1x16xf32>
    %8 = vector.shape_cast %7 : vector<1x16xf32> to vector<1x16xf32>
    %9 = vector.broadcast %8 : vector<1x16xf32> to vector<16x16xf32>
    %cst = arith.constant dense<0.000000e+00> : vector<8x32xf32>
    %10 = tpu.matmul %1, %2, %cst {dimension_numbers = #tpu.dot_dimension_numbers<[1], [0], [0], [1], [0, 0, 1, 1], [], []>} : vector<8x32xf32>, vector<32x32xf32>, vector<8x32xf32> -> vector<8x32xf32>
    %11 = arith.addf %10, %6 : vector<8x32xf32>
    %cst_10 = arith.constant 0.000000e+00 : f32
    %12 = vector.broadcast %cst_10 : f32 to vector<8x32xf32>
    %13 = arith.maximumf %11, %12 : vector<8x32xf32>
    %cst_11 = arith.constant dense<0.000000e+00> : vector<8x32xf32>
    %14 = tpu.matmul %13, %2, %cst_11 {dimension_numbers = #tpu.dot_dimension_numbers<[1], [0], [0], [1], [0, 0, 1, 1], [], []>} : vector<8x32xf32>, vector<32x32xf32>, vector<8x32xf32> -> vector<8x32xf32>
    %15 = arith.addf %14, %6 : vector<8x32xf32>
    %cst_12 = arith.constant 0.000000e+00 : f32
    %16 = vector.broadcast %cst_12 : f32 to vector<8x32xf32>
    %17 = arith.maximumf %15, %16 : vector<8x32xf32>
    %cst_13 = arith.constant dense<0.000000e+00> : vector<8x32xf32>
    %18 = tpu.matmul %17, %2, %cst_13 {dimension_numbers = #tpu.dot_dimension_numbers<[1], [0], [0], [1], [0, 0, 1, 1], [], []>} : vector<8x32xf32>, vector<32x32xf32>, vector<8x32xf32> -> vector<8x32xf32>
    %19 = arith.addf %18, %6 : vector<8x32xf32>
    %cst_14 = arith.constant 0.000000e+00 : f32
    %20 = vector.broadcast %cst_14 : f32 to vector<8x32xf32>
    %21 = arith.maximumf %19, %20 : vector<8x32xf32>
    %22 = tpu.concatenate %1, %21 in 0 : vector<8x32xf32>, vector<8x32xf32> -> vector<16x32xf32>
    %cst_15 = arith.constant dense<0.000000e+00> : vector<16x16xf32>
    %23 = tpu.matmul %22, %3, %cst_15 {dimension_numbers = #tpu.dot_dimension_numbers<[1], [0], [0], [1], [0, 0, 1, 1], [], []>} : vector<16x32xf32>, vector<32x16xf32>, vector<16x16xf32> -> vector<16x16xf32>
    %24 = arith.addf %23, %9 : vector<16x16xf32>
    %25 = vector.extract_strided_slice %24 {offsets = [0, 0], sizes = [8, 16], strides = [1, 1]} : vector<16x16xf32> to vector<8x16xf32>
    %c0_16 = arith.constant 0 : index
    %c0_17 = arith.constant 0 : index
    %c0_18 = arith.constant 0 : index
    %c0_19 = arith.constant 0 : index
    %26 = vector.load %arg7[%c0_16, %c0_17, %c0_18, %c0_19] : memref<1x2x8x16xf32, #tpu.memory_space<vmem>>, vector<1x1x8x16xf32>
    %27 = vector.shape_cast %26 : vector<1x1x8x16xf32> to vector<8x16xf32>
    %28 = vector.shape_cast %25 : vector<8x16xf32> to vector<1x1x8x16xf32>
    tpu.vector_store %arg7[%c0_16, %c0_17, %c0_18, %c0_19], %28 {strides = array<i32>} : memref<1x2x8x16xf32, #tpu.memory_space<vmem>>, vector<1x1x8x16xf32>,
    %29 = vector.extract_strided_slice %24 {offsets = [8, 0], sizes = [8, 16], strides = [1, 1]} : vector<16x16xf32> to vector<8x16xf32>
    %c0_20 = arith.constant 0 : index
    %c1 = arith.constant 1 : index
    %c0_21 = arith.constant 0 : index
    %c0_22 = arith.constant 0 : index
    %30 = vector.load %arg7[%c0_20, %c1, %c0_21, %c0_22] : memref<1x2x8x16xf32, #tpu.memory_space<vmem>>, vector<1x1x8x16xf32>
    %31 = vector.shape_cast %30 : vector<1x1x8x16xf32> to vector<8x16xf32>
    %32 = vector.shape_cast %29 : vector<8x16xf32> to vector<1x1x8x16xf32>
    tpu.vector_store %arg7[%c0_20, %c1, %c0_21, %c0_22], %32 {strides = array<i32>} : memref<1x2x8x16xf32, #tpu.memory_space<vmem>>, vector<1x1x8x16xf32>,
    return
  }
  func.func @transform_0(%arg0: i32, %arg1: i32) -> (i32, i32, i32) {
    %c0_i32 = arith.constant 0 : i32
    %c0_i32_0 = arith.constant 0 : i32
    return %arg0, %arg1, %c0_i32 : i32, i32, i32
  }
  func.func @transform_1(%arg0: i32, %arg1: i32) -> (i32, i32) {
    %c0_i32 = arith.constant 0 : i32
    %c0_i32_0 = arith.constant 0 : i32
    %c0_i32_1 = arith.constant 0 : i32
    return %c0_i32, %c0_i32_0 : i32, i32
  }
  func.func @transform_2(%arg0: i32, %arg1: i32) -> (i32, i32) {
    %c0_i32 = arith.constant 0 : i32
    %c0_i32_0 = arith.constant 0 : i32
    %c0_i32_1 = arith.constant 0 : i32
    return %c0_i32, %c0_i32_0 : i32, i32
  }
  func.func @transform_3(%arg0: i32, %arg1: i32) -> (i32, i32) {
    %c0_i32 = arith.constant 0 : i32
    %c0_i32_0 = arith.constant 0 : i32
    %c0_i32_1 = arith.constant 0 : i32
    return %c0_i32, %c0_i32_0 : i32, i32
  }
  func.func @transform_4(%arg0: i32, %arg1: i32) -> (i32, i32) {
    %c0_i32 = arith.constant 0 : i32
    %c0_i32_0 = arith.constant 0 : i32
    %c0_i32_1 = arith.constant 0 : i32
    return %c0_i32, %c0_i32_0 : i32, i32
  }
  func.func @transform_5(%arg0: i32, %arg1: i32) -> (i32, i32, i32, i32) {
    %c0_i32 = arith.constant 0 : i32
    %c0_i32_0 = arith.constant 0 : i32
    %c0_i32_1 = arith.constant 0 : i32
    return %arg0, %c0_i32, %arg1, %c0_i32_0 : i32, i32, i32, i32
  }
}

module attributes {stable_mosaic.version = 11 : i64} {
  func.func @_encoder_kernel(%arg0: i32, %arg1: i32, %arg2: memref<1x8x32xf32, #tpu.memory_space<vmem>>, %arg3: memref<32x32xf32, #tpu.memory_space<vmem>>, %arg4: memref<1x32xf32, #tpu.memory_space<vmem>>, %arg5: memref<32x16xf32, #tpu.memory_space<vmem>>, %arg6: memref<1x16xf32, #tpu.memory_space<vmem>>, %arg7: memref<1x2x8x16xf32, #tpu.memory_space<vmem>>) attributes {dimension_semantics = [#tpu.dimension_semantics<parallel>, #tpu.dimension_semantics<parallel>], iteration_bounds = array<i64: 2, 1>, scalar_prefetch = 0 : i64, scratch_operands = 0 : i64, tpu.core_type = #tpu.core_type<tc>, window_params = [{transform_indices = @transform_0, window_bounds = array<i64: 1, 8, 32>}, {pipeline_mode = #tpu.pipeline_mode<synchronous>, transform_indices = @transform_1, window_bounds = array<i64: 32, 32>}, {pipeline_mode = #tpu.pipeline_mode<synchronous>, transform_indices = @transform_2, window_bounds = array<i64: 1, 32>}, {pipeline_mode = #tpu.pipeline_mode<synchronous>, transform_indices = @transform_3, window_bounds = array<i64: 32, 16>}, {pipeline_mode = #tpu.pipeline_mode<synchronous>, transform_indices = @transform_4, window_bounds = array<i64: 1, 16>}, {transform_indices = @transform_5, window_bounds = array<i64: 1, 2, 8, 16>}]} {
    %c0 = arith.constant 0 : index
    %c0_0 = arith.constant 0 : index
    %c0_1 = arith.constant 0 : index
    %0 = vector.load %arg2[%c0, %c0_0, %c0_1] : memref<1x8x32xf32, #tpu.memory_space<vmem>>, vector<1x8x32xf32>
    %1 = vector.shape_cast %0 : vector<1x8x32xf32> to vector<8x32xf32>
    %c0_2 = arith.constant 0 : index
    %c0_3 = arith.constant 0 : index
    %2 = vector.load %arg3[%c0_2, %c0_3] : memref<32x32xf32, #tpu.memory_space<vmem>>, vector<32x32xf32>
    %c0_4 = arith.constant 0 : index
    %c0_5 = arith.constant 0 : index
    %3 = vector.load %arg5[%c0_4, %c0_5] : memref<32x16xf32, #tpu.memory_space<vmem>>, vector<32x16xf32>
    %c0_6 = arith.constant 0 : index
    %c0_7 = arith.constant 0 : index
    %4 = vector.load %arg4[%c0_6, %c0_7] : memref<1x32xf32, #tpu.memory_space<vmem>>, vector<1x32xf32>
    %5 = vector.shape_cast %4 : vector<1x32xf32> to vector<1x32xf32>
    %6 = vector.broadcast %5 : vector<1x32xf32> to vector<8x32xf32>
    %c0_8 = arith.constant 0 : index
    %c0_9 = arith.constant 0 : index
    %7 = vector.load %arg6[%c0_8, %c0_9] : memref<1x16xf32, #tpu.memory_space<vmem>>, vector<1x16xf32>
    %8 = vector.shape_cast %7 : vector<1x16xf32> to vector<1x16xf32>
    %9 = vector.broadcast %8 : vector<1x16xf32> to vector<16x16xf32>
    %cst = arith.constant dense<0.000000e+00> : vector<8x32xf32>
    %10 = tpu.matmul %1, %2, %cst {dimension_numbers = #tpu.dot_dimension_numbers<[1], [0], [0], [1], [0, 0, 1, 1], [], []>} : vector<8x32xf32>, vector<32x32xf32>, vector<8x32xf32> -> vector<8x32xf32>
    %11 = arith.addf %10, %6 : vector<8x32xf32>
    %cst_10 = arith.constant 0.000000e+00 : f32
    %12 = vector.broadcast %cst_10 : f32 to vector<8x32xf32>
    %13 = arith.maximumf %11, %12 : vector<8x32xf32>
    %cst_11 = arith.constant dense<0.000000e+00> : vector<8x32xf32>
    %14 = tpu.matmul %13, %2, %cst_11 {dimension_numbers = #tpu.dot_dimension_numbers<[1], [0], [0], [1], [0, 0, 1, 1], [], []>} : vector<8x32xf32>, vector<32x32xf32>, vector<8x32xf32> -> vector<8x32xf32>
    %15 = arith.addf %14, %6 : vector<8x32xf32>
    %cst_12 = arith.constant 0.000000e+00 : f32
    %16 = vector.broadcast %cst_12 : f32 to vector<8x32xf32>
    %17 = arith.maximumf %15, %16 : vector<8x32xf32>
    %cst_13 = arith.constant dense<0.000000e+00> : vector<8x32xf32>
    %18 = tpu.matmul %17, %2, %cst_13 {dimension_numbers = #tpu.dot_dimension_numbers<[1], [0], [0], [1], [0, 0, 1, 1], [], []>} : vector<8x32xf32>, vector<32x32xf32>, vector<8x32xf32> -> vector<8x32xf32>
    %19 = arith.addf %18, %6 : vector<8x32xf32>
    %cst_14 = arith.constant 0.000000e+00 : f32
    %20 = vector.broadcast %cst_14 : f32 to vector<8x32xf32>
    %21 = arith.maximumf %19, %20 : vector<8x32xf32>
    %22 = tpu.concatenate %1, %21 in 0 : vector<8x32xf32>, vector<8x32xf32> -> vector<16x32xf32>
    %cst_15 = arith.constant dense<0.000000e+00> : vector<16x16xf32>
    %23 = tpu.matmul %22, %3, %cst_15 {dimension_numbers = #tpu.dot_dimension_numbers<[1], [0], [0], [1], [0, 0, 1, 1], [], []>} : vector<16x32xf32>, vector<32x16xf32>, vector<16x16xf32> -> vector<16x16xf32>
    %24 = arith.addf %23, %9 : vector<16x16xf32>
    %25 = vector.extract_strided_slice %24 {offsets = [0, 0], sizes = [8, 16], strides = [1, 1]} : vector<16x16xf32> to vector<8x16xf32>
    %c0_16 = arith.constant 0 : index
    %c0_17 = arith.constant 0 : index
    %c0_18 = arith.constant 0 : index
    %c0_19 = arith.constant 0 : index
    %26 = vector.load %arg7[%c0_16, %c0_17, %c0_18, %c0_19] : memref<1x2x8x16xf32, #tpu.memory_space<vmem>>, vector<1x1x8x16xf32>
    %27 = vector.shape_cast %26 : vector<1x1x8x16xf32> to vector<8x16xf32>
    %28 = vector.shape_cast %25 : vector<8x16xf32> to vector<1x1x8x16xf32>
    tpu.vector_store %arg7[%c0_16, %c0_17, %c0_18, %c0_19], %28 {strides = array<i32>} : memref<1x2x8x16xf32, #tpu.memory_space<vmem>>, vector<1x1x8x16xf32>,
    %29 = vector.extract_strided_slice %24 {offsets = [8, 0], sizes = [8, 16], strides = [1, 1]} : vector<16x16xf32> to vector<8x16xf32>
    %c0_20 = arith.constant 0 : index
    %c1 = arith.constant 1 : index
    %c0_21 = arith.constant 0 : index
    %c0_22 = arith.constant 0 : index
    %30 = vector.load %arg7[%c0_20, %c1, %c0_21, %c0_22] : memref<1x2x8x16xf32, #tpu.memory_space<vmem>>, vector<1x1x8x16xf32>
    %31 = vector.shape_cast %30 : vector<1x1x8x16xf32> to vector<8x16xf32>
    %32 = vector.shape_cast %29 : vector<8x16xf32> to vector<1x1x8x16xf32>
    tpu.vector_store %arg7[%c0_20, %c1, %c0_21, %c0_22], %32 {strides = array<i32>} : memref<1x2x8x16xf32, #tpu.memory_space<vmem>>, vector<1x1x8x16xf32>,
    return
  }
  func.func @transform_0(%arg0: i32, %arg1: i32) -> (i32, i32, i32) {
    %c0_i32 = arith.constant 0 : i32
    %c0_i32_0 = arith.constant 0 : i32
    return %arg0, %arg1, %c0_i32 : i32, i32, i32
  }
  func.func @transform_1(%arg0: i32, %arg1: i32) -> (i32, i32) {
    %c0_i32 = arith.constant 0 : i32
    %c0_i32_0 = arith.constant 0 : i32
    %c0_i32_1 = arith.constant 0 : i32
    return %c0_i32, %c0_i32_0 : i32, i32
  }
  func.func @transform_2(%arg0: i32, %arg1: i32) -> (i32, i32) {
    %c0_i32 = arith.constant 0 : i32
    %c0_i32_0 = arith.constant 0 : i32
    %c0_i32_1 = arith.constant 0 : i32
    return %c0_i32, %c0_i32_0 : i32, i32
  }
  func.func @transform_3(%arg0: i32, %arg1: i32) -> (i32, i32) {
    %c0_i32 = arith.constant 0 : i32
    %c0_i32_0 = arith.constant 0 : i32
    %c0_i32_1 = arith.constant 0 : i32
    return %c0_i32, %c0_i32_0 : i32, i32
  }
  func.func @transform_4(%arg0: i32, %arg1: i32) -> (i32, i32) {
    %c0_i32 = arith.constant 0 : i32
    %c0_i32_0 = arith.constant 0 : i32
    %c0_i32_1 = arith.constant 0 : i32
    return %c0_i32, %c0_i32_0 : i32, i32
  }
  func.func @transform_5(%arg0: i32, %arg1: i32) -> (i32, i32, i32, i32) {
    %c0_i32 = arith.constant 0 : i32
    %c0_i32_0 = arith.constant 0 : i32
    %c0_i32_1 = arith.constant 0 : i32
    return %arg0, %c0_i32, %arg1, %c0_i32_0 : i32, i32, i32, i32
  }
}

</mosaic_0001>

<llo_original>
// kernel: tpu_custom_call.1
$region0: #{tpu_custom_call.1}
  #allocation0 [shape = 'u32[]', space=smem, size = 0x4, offset = 0x4, fixed_abs, tag = 'smem constant byte address 0x4 - core index']
  #allocation1 [shape = 'u32[144,128]{1,0:T(1,128)}', space=vmem, size = 0x12000, scoped, tag = 'internal scratch']
  %s0 = inlined_call_operand.vmem [shape: f32[2,8,32], index: 0, kind: input, shape index: {}]
  %s1 = inlined_call_operand.vmem [shape: f32[32,32], index: 1, kind: input, shape index: {}]
  %s2 = inlined_call_operand.vmem [shape: f32[1,32], index: 2, kind: input, shape index: {}]
  %s3 = inlined_call_operand.vmem [shape: f32[32,16], index: 3, kind: input, shape index: {}]
  %s4 = inlined_call_operand.vmem [shape: f32[1,16], index: 4, kind: input, shape index: {}]
  %s5 = inlined_call_operand.hbm [shape: f32[2,2,8,16], index: 5, kind: output, shape index: {}]
  %s6 = sld [smem:[#allocation0]]
  $region53: #{tpu_custom_call.1} parent=0
    _
  %s8 = ssub.s32 1, %s6
  %s9 = scalar_select 0, %s8, %s6
  $region1: #{tpu_custom_call.1} parent=0
    #allocation2 [shape = 'u8[16384]{0}', space=vmem, size = 0x4000, scoped, tag = 'output window, operand 0']
    #allocation3 [shape = 's32[2]{0}', space=sflag, size = 0x8, scoped, tag = 'scoped memory for tpu_custom_call.1']
    %10 = vsyncpa [#allocation3], 0
    %s11 = scalar_lea.sflag [#allocation3], 1
    %12 = vsyncpa %s11, 0
    loop: start=0, step=1, limit=4
    $region2: #{tpu_custom_call.1} parent=1 // loop_pre_header
      _
    $region3: #{tpu_custom_call.1} parent=1 // loop_header
      %s14 = sphi 0, %s18
      %p15 = scmp.ge.s32.totalorder %s14, 4
      %s21 = sphi 0, %s33
      %s22 = sphi 0, %s29
      %s23 = sphi 0, %s21
      %s24 = sphi 0, %s22
      %s25 = sphi 0, %s23
      %s26 = sphi 0, %s24
      %s38 = sphi 0, %s40
      %s41 = sphi 0, %s38
      %s42 = sphi 0, %s41
      %s58 = sphi 0, %s42
      %s62 = sphi 0, %s62
      %s64 = sphi 0, %s62
      %s65 = sphi 0, %s64
      %s79 = sphi 0, %s65
      %s83 = sphi 0, %s83
      %s85 = sphi 0, %s83
      %s86 = sphi 0, %s85
      %s100 = sphi 0, %s86
      %s104 = sphi 0, %s104
      %s106 = sphi 0, %s104
      %s107 = sphi 0, %s106
      %s121 = sphi 0, %s107
      %s125 = sphi 0, %s125
      %s127 = sphi 0, %s125
      %s128 = sphi 0, %s127
      %s142 = sphi 0, %s128
      %s150 = sphi 0, %s152
      %s153 = sphi 0, %s150
      %s154 = sphi 0, %s153
      %s170 = sphi 0, %s154
    $region4: #{tpu_custom_call.1} parent=1 // loop_header_branch
      %17 = sbr.rel (%p15) target = $region8
    $region5: #{tpu_custom_call.1} parent=1 // loop_body
      %s19 = ssub.s32 %s14, 1
      %s20 = ssub.s32 %s14, 2
      %s27 = sadd.s32 1, %s22
      %p28 = scmp.ge.s32.totalorder %s27, 1
      %s29 = scalar_select %p28, 0, %s27
      %s30 = sadd.s32 1, %s21
      %s31 = scalar_select %p28, %s30, %s21
      %p32 = scmp.ge.s32.totalorder %s31, 2
      %s33 = scalar_select %p32, 0, %s31
      %s34 = ssub.s32 %s21, %s33
      %s35 = ssub.s32 %s22, %s29
      %s36 = sor.u32 %s34, %s35
      %p37 = scmp.eq.s32.totalorder %s36, 0
      %s39 = sadd.s32 %s38, 1
      %s40 = scalar_select %p37, %s38, %s39
      %p43 = pneg %p37
      %p44 = scmp.eq.s32.totalorder %s14, 1
      %p45 = por %p43, %p44
      %p46 = scmp.ne.s32.totalorder %s38, %s41
      %p47 = scmp.eq.s32.totalorder %s14, 0
      %p48 = por %p46, %p47
      %p49 = scmp.ne.s32.totalorder %s38, %s41
      %p50 = scmp.eq.s32.totalorder %s19, 1
      %p51 = por %p49, %p50
      %p52 = scmp.ne.s32.totalorder %s41, %s42
      %p53 = scmp.eq.s32.totalorder %s19, 0
      %p54 = por %p52, %p53
      %p55 = scmp.ne.s32.totalorder %s41, %s42
      %p56 = scmp.eq.s32.totalorder %s20, 1
      %p57 = por %p55, %p56
      %p59 = scmp.ne.s32.totalorder %s42, %s58
      %p60 = scmp.eq.s32.totalorder %s20, 0
      %p61 = por %p59, %p60
      %s63 = sadd.s32 %s62, 1
      %p66 = scmp.eq.s32.totalorder %s14, 1
      %p67 = scmp.ne.s32.totalorder %s62, %s64
      %p68 = scmp.eq.s32.totalorder %s14, 0
      %p69 = por %p67, %p68
      %p70 = scmp.ne.s32.totalorder %s62, %s64
      %p71 = scmp.eq.s32.totalorder %s19, 1
      %p72 = por %p70, %p71
      %p73 = scmp.ne.s32.totalorder %s64, %s65
      %p74 = scmp.eq.s32.totalorder %s19, 0
      %p75 = por %p73, %p74
      %p76 = scmp.ne.s32.totalorder %s64, %s65
      %p77 = scmp.eq.s32.totalorder %s20, 1
      %p78 = por %p76, %p77
      %p80 = scmp.ne.s32.totalorder %s65, %s79
      %p81 = scmp.eq.s32.totalorder %s20, 0
      %p82 = por %p80, %p81
      %s84 = sadd.s32 %s83, 1
      %p87 = scmp.eq.s32.totalorder %s14, 1
      %p88 = scmp.ne.s32.totalorder %s83, %s85
      %p89 = scmp.eq.s32.totalorder %s14, 0
      %p90 = por %p88, %p89
      %p91 = scmp.ne.s32.totalorder %s83, %s85
      %p92 = scmp.eq.s32.totalorder %s19, 1
      %p93 = por %p91, %p92
      %p94 = scmp.ne.s32.totalorder %s85, %s86
      %p95 = scmp.eq.s32.totalorder %s19, 0
      %p96 = por %p94, %p95
      %p97 = scmp.ne.s32.totalorder %s85, %s86
      %p98 = scmp.eq.s32.totalorder %s20, 1
      %p99 = por %p97, %p98
      %p101 = scmp.ne.s32.totalorder %s86, %s100
      %p102 = scmp.eq.s32.totalorder %s20, 0
      %p103 = por %p101, %p102
      %s105 = sadd.s32 %s104, 1
      %p108 = scmp.eq.s32.totalorder %s14, 1
      %p109 = scmp.ne.s32.totalorder %s104, %s106
      %p110 = scmp.eq.s32.totalorder %s14, 0
      %p111 = por %p109, %p110
      %p112 = scmp.ne.s32.totalorder %s104, %s106
      %p113 = scmp.eq.s32.totalorder %s19, 1
      %p114 = por %p112, %p113
      %p115 = scmp.ne.s32.totalorder %s106, %s107
      %p116 = scmp.eq.s32.totalorder %s19, 0
      %p117 = por %p115, %p116
      %p118 = scmp.ne.s32.totalorder %s106, %s107
      %p119 = scmp.eq.s32.totalorder %s20, 1
      %p120 = por %p118, %p119
      %p122 = scmp.ne.s32.totalorder %s107, %s121
      %p123 = scmp.eq.s32.totalorder %s20, 0
      %p124 = por %p122, %p123
      %s126 = sadd.s32 %s125, 1
      %p129 = scmp.eq.s32.totalorder %s14, 1
      %p130 = scmp.ne.s32.totalorder %s125, %s127
      %p131 = scmp.eq.s32.totalorder %s14, 0
      %p132 = por %p130, %p131
      %p133 = scmp.ne.s32.totalorder %s125, %s127
      %p134 = scmp.eq.s32.totalorder %s19, 1
      %p135 = por %p133, %p134
      %p136 = scmp.ne.s32.totalorder %s127, %s128
      %p137 = scmp.eq.s32.totalorder %s19, 0
      %p138 = por %p136, %p137
      %p139 = scmp.ne.s32.totalorder %s127, %s128
      %p140 = scmp.eq.s32.totalorder %s20, 1
      %p141 = por %p139, %p140
      %p143 = scmp.ne.s32.totalorder %s128, %s142
      %p144 = scmp.eq.s32.totalorder %s20, 0
      %p145 = por %p143, %p144
      %s146 = ssub.s32 %s21, %s33
      %s147 = ssub.s32 %s22, %s29
      %s148 = sor.u32 %s146, %s147
      %p149 = scmp.eq.s32.totalorder %s148, 0
      %s151 = sadd.s32 %s150, 1
      %s152 = scalar_select %p149, %s150, %s151
      %p155 = pneg %p149
      %p156 = scmp.eq.s32.totalorder %s14, 1
      %p157 = por %p155, %p156
      %p158 = scmp.ne.s32.totalorder %s150, %s153
      %p159 = scmp.eq.s32.totalorder %s14, 0
      %p160 = por %p158, %p159
      %p161 = scmp.ne.s32.totalorder %s150, %s153
      %p162 = scmp.eq.s32.totalorder %s19, 1
      %p163 = por %p161, %p162
      %p164 = scmp.ne.s32.totalorder %s153, %s154
      %p165 = scmp.eq.s32.totalorder %s19, 0
      %p166 = por %p164, %p165
      %p167 = scmp.ne.s32.totalorder %s153, %s154
      %p168 = scmp.eq.s32.totalorder %s20, 1
      %p169 = por %p167, %p168
      %p171 = scmp.ne.s32.totalorder %s154, %s170
      %p172 = scmp.eq.s32.totalorder %s20, 0
      %p173 = por %p171, %p172
      %p174 = scmp.le.s32.totalorder 1, %s14
      %p175 = scmp.lt.s32.totalorder %s14, 3
      %p176 = pnand %p174, %p175
      %p177 = pneg %p176
      // Predicated region
      $region9: #{tpu_custom_call.1} parent=5 // pred_check
        _
      $region10: #{tpu_custom_call.1} parent=5 // pred_check_branch
        %179 = sbr.rel (%p176) target = $region12
      $region11: #{tpu_custom_call.1} parent=5 // pred_region
        %s180 = ssub.s32 %s14, 1
        // Predicated region
        $region13: #{tpu_custom_call.1} parent=11 // pred_check
          %p181 = pneg %p75
        $region14: #{tpu_custom_call.1} parent=11 // pred_check_branch
          %183 = sbr.rel (%p181) target = $region16
        $region15: #{tpu_custom_call.1} parent=11 // pred_region
          _
        $region16: #{tpu_custom_call.1} parent=11 // pred_fallthru
          _
        // Predicated region
        $region17: #{tpu_custom_call.1} parent=11 // pred_check
          %p184 = pneg %p96
        $region18: #{tpu_custom_call.1} parent=11 // pred_check_branch
          %186 = sbr.rel (%p184) target = $region20
        $region19: #{tpu_custom_call.1} parent=11 // pred_region
          _
        $region20: #{tpu_custom_call.1} parent=11 // pred_fallthru
          _
        // Predicated region
        $region21: #{tpu_custom_call.1} parent=11 // pred_check
          %p187 = pneg %p117
        $region22: #{tpu_custom_call.1} parent=11 // pred_check_branch
          %189 = sbr.rel (%p187) target = $region24
        $region23: #{tpu_custom_call.1} parent=11 // pred_region
          _
        $region24: #{tpu_custom_call.1} parent=11 // pred_fallthru
          _
        // Predicated region
        $region25: #{tpu_custom_call.1} parent=11 // pred_check
          %p190 = pneg %p138
        $region26: #{tpu_custom_call.1} parent=11 // pred_check_branch
          %192 = sbr.rel (%p190) target = $region28
        $region27: #{tpu_custom_call.1} parent=11 // pred_region
          _
        $region28: #{tpu_custom_call.1} parent=11 // pred_fallthru
          _
      $region12: #{tpu_custom_call.1} parent=5 // pred_fallthru
        _
      %p193 = scmp.lt.s32.totalorder %s14, 2
      // Predicated region
      $region29: #{tpu_custom_call.1} parent=5 // pred_check
        %p194 = pneg %p193
      $region30: #{tpu_custom_call.1} parent=5 // pred_check_branch
        %196 = sbr.rel (%p194) target = $region32
      $region31: #{tpu_custom_call.1} parent=5 // pred_region
        // Predicated region
        $region33: #{tpu_custom_call.1} parent=31 // pred_check
          %p197 = pneg %p48
        $region34: #{tpu_custom_call.1} parent=31 // pred_check_branch
          %199 = sbr.rel (%p197) target = $region36
        $region35: #{tpu_custom_call.1} parent=31 // pred_region
          %p200 = scmp.lt.s32.totalorder %s21, 1
          %s201 = scalar_select %p200, %s21, 1
          %p202 = scmp.lt.s32.totalorder %s22, 0
          %s203 = scalar_select %p202, %s22, 0
          %s204 = sadd.s32 %s203, %s201
          %s205 = smul.addr %s204, 8
          %s206 = scalar_lea.vmem %s0, %s205
        $region36: #{tpu_custom_call.1} parent=31 // pred_fallthru
          _
      $region32: #{tpu_custom_call.1} parent=5 // pred_fallthru
        _
      %p207 = scmp.le.s32.totalorder 1, %s14
      %p208 = scmp.lt.s32.totalorder %s14, 3
      %p209 = pnand %p207, %p208
      %p210 = pneg %p209
      // Predicated region
      $region37: #{tpu_custom_call.1} parent=5 // pred_check
        _
      $region38: #{tpu_custom_call.1} parent=5 // pred_check_branch
        %212 = sbr.rel (%p209) target = $region40
      $region39: #{tpu_custom_call.1} parent=5 // pred_region
        %s213 = ssub.s32 %s14, 1
        %p214 = scmp.lt.s32.totalorder %s23, 1
        %s215 = scalar_select %p214, %s23, 1
        %p216 = scmp.lt.s32.totalorder %s24, 0
        %s217 = scalar_select %p216, %s24, 0
        %s218 = sadd.s32 %s217, %s215
        %s219 = smul.addr %s218, 8
        %s220 = scalar_lea.vmem %s0, %s219
        %p221 = pneg %p54
        %p222 = pneg %p51
        %p223 = pneg %p75
        %p224 = pneg %p72
        %p225 = pneg %p96
        %p226 = pneg %p93
        %p227 = pneg %p117
        %p228 = pneg %p114
        %p229 = pneg %p138
        %p230 = pneg %p135
        %p231 = pneg %p166
        %p232 = pneg %p163
        %s233 = sand.u32 %s153, 1
        %s234 = scalar_lea.sflag [#allocation3], %s233
        %s235 = sand.u32 %s153, 1
        %s236 = smul.addr %s235, 16
        %s237 = scalar_lea.vmem [#allocation2], %s236
        %p238 = scmp.lt.s32.totalorder %s23, 1
        %s239 = scalar_select %p238, %s23, 1
        %p240 = scmp.lt.s32.totalorder %s24, 0
        %s241 = scalar_select %p240, %s24, 0
        %s242 = sadd.s32 %s241, %s239
        %s243 = smul.addr %s242, 8
        %s244 = scalar_lea.vmem %s0, %s243
        %v245 = vld [vmem:[%s244] sm:$0xff]
        %v246 = vld [vmem:[%s1] sm:$0xff]
        %v247 = vld [vmem:[%s1 + $0x8] sm:$0xff]
        %v248 = vld [vmem:[%s1 + $0x10] sm:$0xff]
        %v249 = vld [vmem:[%s1 + $0x18] sm:$0xff]
        %v250 = vld [vmem:[%s3] sm:$0xff]
        %v251 = vld [vmem:[%s3 + $0x8] sm:$0xff]
        %v252 = vld [vmem:[%s3 + $0x10] sm:$0xff]
        %v253 = vld [vmem:[%s3 + $0x18] sm:$0xff]
        %v254 = vld [vmem:[%s2] sm:$0x1]
        %v256 = vlaneseq
        %v257 = vshrl.u32 %v256, 7
        %v258 = vsub.s32 0, %v257
        %v259 = vrot.slane %v254, %v258
        %v261 = vld [vmem:[%s4] sm:$0x1]
        %v263 = vlaneseq
        %v264 = vshrl.u32 %v263, 7
        %v265 = vsub.s32 0, %v264
        %v266 = vrot.slane %v261, %v265
        %vm268 = vcmask 261120
        %v270 = vsel %vm268, %v245, 0
        %272 = vmatprep.subr.mxu0 0.0
        %273 = vmatpush1.msra.mxu0 %v246
        %274 = vmatprep.subr.mxu0 0.0
        %275 = vmatpush1.msra.mxu0 %v247
        %276 = vmatprep.subr.mxu0 0.0
        %277 = vmatpush1.msra.mxu0 %v248
        %278 = vmatprep.subr.mxu0 0.0
        %279 = vmatpush1.msra.mxu0 %v249
        %280 = vmatprep.subr.mxu0 0.0
        %281 = vmatpush1.msra.mxu0 0.0
        %282 = vmatprep.subr.mxu0 0.0
        %283 = vmatpush1.msra.mxu0 0.0
        %284 = vmatprep.subr.mxu0 0.0
        %285 = vmatpush1.msra.mxu0 0.0
        %286 = vmatprep.subr.mxu0 0.0
        %287 = vmatpush1.msra.mxu0 0.0
        %288 = vmatprep.subr.mxu0 0.0
        %289 = vmatpush1.msra.mxu0 0.0
        %290 = vmatprep.subr.mxu0 0.0
        %291 = vmatpush1.msra.mxu0 0.0
        %292 = vmatprep.subr.mxu0 0.0
        %293 = vmatpush1.msra.mxu0 0.0
        %294 = vmatprep.subr.mxu0 0.0
        %295 = vmatpush1.msra.mxu0 0.0
        %296 = vmatprep.subr.mxu0 0.0
        %297 = vmatpush1.msra.mxu0 0.0
        %298 = vmatprep.subr.mxu0 0.0
        %299 = vmatpush1.msra.mxu0 0.0
        %300 = vmatprep.subr.mxu0 0.0
        %301 = vmatpush1.msra.mxu0 0.0
        %302 = vmatprep.subr.mxu0 0.0
        %303 = vmatpush1.msra.mxu0 0.0
        %304 = vmatprep.subr.mxu0 0.0
        %305 = vmatpush1.msra.mxu0 0.0
        %306 = vmatprep.subr.mxu0 0.0
        %307 = vmatpush1.msra.mxu0 0.0
        %308 = vmatprep.subr.mxu0 0.0
        %309 = vmatpush1.msra.mxu0 0.0
        %310 = vmatprep.subr.mxu0 0.0
        %311 = vmatpush1.msra.mxu0 0.0
        %312 = vmatprep.subr.mxu0 0.0
        %313 = vmatpush1.msra.mxu0 0.0
        %314 = vmatprep.subr.mxu0 0.0
        %315 = vmatpush1.msra.mxu0 0.0
        %316 = vmatprep.subr.mxu0 0.0
        %317 = vmatpush1.msra.mxu0 0.0
        %318 = vmatprep.subr.mxu0 0.0
        %319 = vmatpush1.msra.mxu0 0.0
        %320 = vmatprep.subr.mxu0 0.0
        %321 = vmatpush1.msra.mxu0 0.0
        %322 = vmatprep.subr.mxu0 0.0
        %323 = vmatpush1.msra.mxu0 0.0
        %324 = vmatprep.subr.mxu0 0.0
        %325 = vmatpush1.msra.mxu0 0.0
        %326 = vmatprep.subr.mxu0 0.0
        %327 = vmatpush1.msra.mxu0 0.0
        %328 = vmatprep.subr.mxu0 0.0
        %329 = vmatpush1.msra.mxu0 0.0
        %330 = vmatprep.subr.mxu0 0.0
        %331 = vmatpush1.msra.mxu0 0.0
        %332 = vmatprep.subr.mxu0 0.0
        %333 = vmatpush1.msra.mxu0 0.0
        %334 = vmatprep.subr.mxu0 0.0
        %335 = vmatpush1.msra.mxu0 0.0
        %336 = vmatprep.mubr.f32.mxu0 0.0
        %337 = vmatmul.mubr.f32.gmra.mrb[0].mxu0 %v270
        %v338 = vpop.f32.mrb[0].mxu0
        %v339 = vadd.f32 %v259, %v338
        %v340 = vpop.f32.mrb[0].mxu0
        %341 = vdwg.mxu0
        %v342 = vmax.f32 %v339, 0.0
        %v344 = vsel %vm268, %v342, 0
        %346 = vmatprep.subr.mxu0 0.0
        %347 = vmatpush1.msra.mxu0 %v246
        %348 = vmatprep.subr.mxu0 0.0
        %349 = vmatpush1.msra.mxu0 %v247
        %350 = vmatprep.subr.mxu0 0.0
        %351 = vmatpush1.msra.mxu0 %v248
        %352 = vmatprep.subr.mxu0 0.0
        %353 = vmatpush1.msra.mxu0 %v249
        %354 = vmatprep.subr.mxu0 0.0
        %355 = vmatpush1.msra.mxu0 0.0
        %356 = vmatprep.subr.mxu0 0.0
        %357 = vmatpush1.msra.mxu0 0.0
        %358 = vmatprep.subr.mxu0 0.0
        %359 = vmatpush1.msra.mxu0 0.0
        %360 = vmatprep.subr.mxu0 0.0
        %361 = vmatpush1.msra.mxu0 0.0
        %362 = vmatprep.subr.mxu0 0.0
        %363 = vmatpush1.msra.mxu0 0.0
        %364 = vmatprep.subr.mxu0 0.0
        %365 = vmatpush1.msra.mxu0 0.0
        %366 = vmatprep.subr.mxu0 0.0
        %367 = vmatpush1.msra.mxu0 0.0
        %368 = vmatprep.subr.mxu0 0.0
        %369 = vmatpush1.msra.mxu0 0.0
        %370 = vmatprep.subr.mxu0 0.0
        %371 = vmatpush1.msra.mxu0 0.0
        %372 = vmatprep.subr.mxu0 0.0
        %373 = vmatpush1.msra.mxu0 0.0
        %374 = vmatprep.subr.mxu0 0.0
        %375 = vmatpush1.msra.mxu0 0.0
        %376 = vmatprep.subr.mxu0 0.0
        %377 = vmatpush1.msra.mxu0 0.0
        %378 = vmatprep.subr.mxu0 0.0
        %379 = vmatpush1.msra.mxu0 0.0
        %380 = vmatprep.subr.mxu0 0.0
        %381 = vmatpush1.msra.mxu0 0.0
        %382 = vmatprep.subr.mxu0 0.0
        %383 = vmatpush1.msra.mxu0 0.0
        %384 = vmatprep.subr.mxu0 0.0
        %385 = vmatpush1.msra.mxu0 0.0
        %386 = vmatprep.subr.mxu0 0.0
        %387 = vmatpush1.msra.mxu0 0.0
        %388 = vmatprep.subr.mxu0 0.0
        %389 = vmatpush1.msra.mxu0 0.0
        %390 = vmatprep.subr.mxu0 0.0
        %391 = vmatpush1.msra.mxu0 0.0
        %392 = vmatprep.subr.mxu0 0.0
        %393 = vmatpush1.msra.mxu0 0.0
        %394 = vmatprep.subr.mxu0 0.0
        %395 = vmatpush1.msra.mxu0 0.0
        %396 = vmatprep.subr.mxu0 0.0
        %397 = vmatpush1.msra.mxu0 0.0
        %398 = vmatprep.subr.mxu0 0.0
        %399 = vmatpush1.msra.mxu0 0.0
        %400 = vmatprep.subr.mxu0 0.0
        %401 = vmatpush1.msra.mxu0 0.0
        %402 = vmatprep.subr.mxu0 0.0
        %403 = vmatpush1.msra.mxu0 0.0
        %404 = vmatprep.subr.mxu0 0.0
        %405 = vmatpush1.msra.mxu0 0.0
        %406 = vmatprep.subr.mxu0 0.0
        %407 = vmatpush1.msra.mxu0 0.0
        %408 = vmatprep.subr.mxu0 0.0
        %409 = vmatpush1.msra.mxu0 0.0
        %410 = vmatprep.mubr.f32.mxu0 0.0
        %411 = vmatmul.mubr.f32.gmra.mrb[0].mxu0 %v344
        %v412 = vpop.f32.mrb[0].mxu0
        %v413 = vadd.f32 %v259, %v412
        %v414 = vpop.f32.mrb[0].mxu0
        %415 = vdwg.mxu0
        %v416 = vmax.f32 %v413, 0.0
        %v418 = vsel %vm268, %v416, 0
        %420 = vmatprep.subr.mxu0 0.0
        %421 = vmatpush1.msra.mxu0 %v246
        %422 = vmatprep.subr.mxu0 0.0
        %423 = vmatpush1.msra.mxu0 %v247
        %424 = vmatprep.subr.mxu0 0.0
        %425 = vmatpush1.msra.mxu0 %v248
        %426 = vmatprep.subr.mxu0 0.0
        %427 = vmatpush1.msra.mxu0 %v249
        %428 = vmatprep.subr.mxu0 0.0
        %429 = vmatpush1.msra.mxu0 0.0
        %430 = vmatprep.subr.mxu0 0.0
        %431 = vmatpush1.msra.mxu0 0.0
        %432 = vmatprep.subr.mxu0 0.0
        %433 = vmatpush1.msra.mxu0 0.0
        %434 = vmatprep.subr.mxu0 0.0
        %435 = vmatpush1.msra.mxu0 0.0
        %436 = vmatprep.subr.mxu0 0.0
        %437 = vmatpush1.msra.mxu0 0.0
        %438 = vmatprep.subr.mxu0 0.0
        %439 = vmatpush1.msra.mxu0 0.0
        %440 = vmatprep.subr.mxu0 0.0
        %441 = vmatpush1.msra.mxu0 0.0
        %442 = vmatprep.subr.mxu0 0.0
        %443 = vmatpush1.msra.mxu0 0.0
        %444 = vmatprep.subr.mxu0 0.0
        %445 = vmatpush1.msra.mxu0 0.0
        %446 = vmatprep.subr.mxu0 0.0
        %447 = vmatpush1.msra.mxu0 0.0
        %448 = vmatprep.subr.mxu0 0.0
        %449 = vmatpush1.msra.mxu0 0.0
        %450 = vmatprep.subr.mxu0 0.0
        %451 = vmatpush1.msra.mxu0 0.0
        %452 = vmatprep.subr.mxu0 0.0
        %453 = vmatpush1.msra.mxu0 0.0
        %454 = vmatprep.subr.mxu0 0.0
        %455 = vmatpush1.msra.mxu0 0.0
        %456 = vmatprep.subr.mxu0 0.0
        %457 = vmatpush1.msra.mxu0 0.0
        %458 = vmatprep.subr.mxu0 0.0
        %459 = vmatpush1.msra.mxu0 0.0
        %460 = vmatprep.subr.mxu0 0.0
        %461 = vmatpush1.msra.mxu0 0.0
        %462 = vmatprep.subr.mxu0 0.0
        %463 = vmatpush1.msra.mxu0 0.0
        %464 = vmatprep.subr.mxu0 0.0
        %465 = vmatpush1.msra.mxu0 0.0
        %466 = vmatprep.subr.mxu0 0.0
        %467 = vmatpush1.msra.mxu0 0.0
        %468 = vmatprep.subr.mxu0 0.0
        %469 = vmatpush1.msra.mxu0 0.0
        %470 = vmatprep.subr.mxu0 0.0
        %471 = vmatpush1.msra.mxu0 0.0
        %472 = vmatprep.subr.mxu0 0.0
        %473 = vmatpush1.msra.mxu0 0.0
        %474 = vmatprep.subr.mxu0 0.0
        %475 = vmatpush1.msra.mxu0 0.0
        %476 = vmatprep.subr.mxu0 0.0
        %477 = vmatpush1.msra.mxu0 0.0
        %478 = vmatprep.subr.mxu0 0.0
        %479 = vmatpush1.msra.mxu0 0.0
        %480 = vmatprep.subr.mxu0 0.0
        %481 = vmatpush1.msra.mxu0 0.0
        %482 = vmatprep.subr.mxu0 0.0
        %483 = vmatpush1.msra.mxu0 0.0
        %484 = vmatprep.mubr.f32.mxu0 0.0
        %485 = vmatmul.mubr.f32.gmra.mrb[0].mxu0 %v418
        %v486 = vpop.f32.mrb[0].mxu0
        %v487 = vadd.f32 %v259, %v486
        %v488 = vpop.f32.mrb[0].mxu0
        %489 = vdwg.mxu0
        %v490 = vmax.f32 %v487, 0.0
        %v492 = vsel %vm268, %v490, 0
        %494 = vmatprep.subr.mxu0 0.0
        %495 = vmatpush1.msra.mxu0 %v250
        %496 = vmatprep.subr.mxu0 0.0
        %497 = vmatpush1.msra.mxu0 %v251
        %498 = vmatprep.subr.mxu0 0.0
        %499 = vmatpush1.msra.mxu0 %v252
        %500 = vmatprep.subr.mxu0 0.0
        %501 = vmatpush1.msra.mxu0 %v253
        %502 = vmatprep.subr.mxu0 0.0
        %503 = vmatpush1.msra.mxu0 0.0
        %504 = vmatprep.subr.mxu0 0.0
        %505 = vmatpush1.msra.mxu0 0.0
        %506 = vmatprep.subr.mxu0 0.0
        %507 = vmatpush1.msra.mxu0 0.0
        %508 = vmatprep.subr.mxu0 0.0
        %509 = vmatpush1.msra.mxu0 0.0
        %510 = vmatprep.subr.mxu0 0.0
        %511 = vmatpush1.msra.mxu0 0.0
        %512 = vmatprep.subr.mxu0 0.0
        %513 = vmatpush1.msra.mxu0 0.0
        %514 = vmatprep.subr.mxu0 0.0
        %515 = vmatpush1.msra.mxu0 0.0
        %516 = vmatprep.subr.mxu0 0.0
        %517 = vmatpush1.msra.mxu0 0.0
        %518 = vmatprep.subr.mxu0 0.0
        %519 = vmatpush1.msra.mxu0 0.0
        %520 = vmatprep.subr.mxu0 0.0
        %521 = vmatpush1.msra.mxu0 0.0
        %522 = vmatprep.subr.mxu0 0.0
        %523 = vmatpush1.msra.mxu0 0.0
        %524 = vmatprep.subr.mxu0 0.0
        %525 = vmatpush1.msra.mxu0 0.0
        %526 = vmatprep.subr.mxu0 0.0
        %527 = vmatpush1.msra.mxu0 0.0
        %528 = vmatprep.subr.mxu0 0.0
        %529 = vmatpush1.msra.mxu0 0.0
        %530 = vmatprep.subr.mxu0 0.0
        %531 = vmatpush1.msra.mxu0 0.0
        %532 = vmatprep.subr.mxu0 0.0
        %533 = vmatpush1.msra.mxu0 0.0
        %534 = vmatprep.subr.mxu0 0.0
        %535 = vmatpush1.msra.mxu0 0.0
        %536 = vmatprep.subr.mxu0 0.0
        %537 = vmatpush1.msra.mxu0 0.0
        %538 = vmatprep.subr.mxu0 0.0
        %539 = vmatpush1.msra.mxu0 0.0
        %540 = vmatprep.subr.mxu0 0.0
        %541 = vmatpush1.msra.mxu0 0.0
        %542 = vmatprep.subr.mxu0 0.0
        %543 = vmatpush1.msra.mxu0 0.0
        %544 = vmatprep.subr.mxu0 0.0
        %545 = vmatpush1.msra.mxu0 0.0
        %546 = vmatprep.subr.mxu0 0.0
        %547 = vmatpush1.msra.mxu0 0.0
        %548 = vmatprep.subr.mxu0 0.0
        %549 = vmatpush1.msra.mxu0 0.0
        %550 = vmatprep.subr.mxu0 0.0
        %551 = vmatpush1.msra.mxu0 0.0
        %552 = vmatprep.subr.mxu0 0.0
        %553 = vmatpush1.msra.mxu0 0.0
        %554 = vmatprep.subr.mxu0 0.0
        %555 = vmatpush1.msra.mxu0 0.0
        %556 = vmatprep.subr.mxu0 0.0
        %557 = vmatpush1.msra.mxu0 0.0
        %558 = vmatprep.mubr.f32.mxu0 0.0
        %559 = vmatmul.mubr.f32.gmra.mrb[0].mxu0 %v270
        %v560 = vpop.f32.mrb[0].mxu0
        %v561 = vadd.f32 %v266, %v560
        %v562 = vpop.f32.mrb[0].mxu0
        %563 = vmatprep.mubr.f32.mxu0 0.0
        %564 = vmatmul.mubr.f32.gmra.mrb[0].mxu0 %v492
        %v565 = vpop.f32.mrb[0].mxu0
        %v566 = vadd.f32 %v266, %v565
        %v567 = vpop.f32.mrb[0].mxu0
        %568 = vdwg.mxu0
        %vm569 = vcmask 130048
        %570 = vst.msk [vmem:[%s237] sm:$0xff] %vm569, %v561
        %s571 = scalar_lea.vmem %s237, 8 [#allocation2]
        %572 = vst.msk [vmem:[%s571] sm:$0xff] %vm569, %v566
        %s573 = sand.u32 %s153, 1
        %s574 = scalar_lea.sflag [#allocation3], %s573
        %s575 = sand.u32 %s153, 1
        %s576 = smul.addr %s575, 16
        %s577 = scalar_lea.vmem [#allocation2], %s576
        // Predicated region
        $region41: #{tpu_custom_call.1} parent=39 // pred_check
          %p578 = pneg %p163
        $region42: #{tpu_custom_call.1} parent=39 // pred_check_branch
          %580 = sbr.rel (%p578) target = $region44
        $region43: #{tpu_custom_call.1} parent=39 // pred_region
          %s582 = ssub.s32 256, 256
          %583 = vsyncadd %s574, %s582
          %s584 = smul.addr %s23, 2
          %s585 = sadd.s32 %s24, %s584
          %s586 = smul.addr %s585, 128
          %s587 = scalar_lea.hbm %s5, %s586
          %s588 = sshll.u32 %s577, 4
          %s589 = int_to_ptr.vmem [resolvable:$true] %s588
          %594 = dma.vmem_to_hbm [thread:$0]  %s589, 256, %s587, %s574, 128, 128, 8
        $region44: #{tpu_custom_call.1} parent=39 // pred_fallthru
          _
      $region40: #{tpu_custom_call.1} parent=5 // pred_fallthru
        _
      %p595 = scmp.le.s32.totalorder 2, %s14
      // Predicated region
      $region45: #{tpu_custom_call.1} parent=5 // pred_check
        %p596 = pneg %p595
      $region46: #{tpu_custom_call.1} parent=5 // pred_check_branch
        %598 = sbr.rel (%p596) target = $region48
      $region47: #{tpu_custom_call.1} parent=5 // pred_region
        %s599 = ssub.s32 %s14, 2
        // Predicated region
        $region49: #{tpu_custom_call.1} parent=47 // pred_check
          %p600 = pneg %p169
        $region50: #{tpu_custom_call.1} parent=47 // pred_check_branch
          %602 = sbr.rel (%p600) target = $region52
        $region51: #{tpu_custom_call.1} parent=47 // pred_region
          %s603 = sand.u32 %s154, 1
          %s604 = scalar_lea.sflag [#allocation3], %s603
          %s605 = sand.u32 %s154, 1
          %s606 = smul.addr %s605, 16
          %s607 = scalar_lea.vmem [#allocation2], %s606
          %608 = dma.done %s604, 256
        $region52: #{tpu_custom_call.1} parent=47 // pred_fallthru
          _
      $region48: #{tpu_custom_call.1} parent=5 // pred_fallthru
        _
    $region6: #{tpu_custom_call.1} parent=1 // loop_footer
      %s18 = sadd.s32 1, %s14
    $region7: #{tpu_custom_call.1} parent=1 // loop_footer_branch
      %13 = sbr.rel target = $region3
    $region8: #{tpu_custom_call.1} parent=1 // loop_exit
      _
    %609 = vsyncpa [#allocation3], 1
    %s610 = scalar_lea.sflag [#allocation3], 1
    %611 = vsyncpa %s610, 1

// kernel: tpu_custom_call.1
$region0: #{tpu_custom_call.1}
  #allocation0 [shape = 'u32[]', space=smem, size = 0x4, offset = 0x4, fixed_abs, tag = 'smem constant byte address 0x4 - core index']
  #allocation1 [shape = 'u32[144,128]{1,0:T(1,128)}', space=vmem, size = 0x12000, scoped, tag = 'internal scratch']
  %s0 = inlined_call_operand.vmem [shape: f32[2,8,32], index: 0, kind: input, shape index: {}]
  %s1 = inlined_call_operand.vmem [shape: f32[32,32], index: 1, kind: input, shape index: {}]
  %s2 = inlined_call_operand.vmem [shape: f32[1,32], index: 2, kind: input, shape index: {}]
  %s3 = inlined_call_operand.vmem [shape: f32[32,16], index: 3, kind: input, shape index: {}]
  %s4 = inlined_call_operand.vmem [shape: f32[1,16], index: 4, kind: input, shape index: {}]
  %s5 = inlined_call_operand.hbm [shape: f32[2,2,8,16], index: 5, kind: output, shape index: {}]
  %s6 = sld [smem:[#allocation0]]
  $region53: #{tpu_custom_call.1} parent=0
    _
  %s8 = ssub.s32 1, %s6
  %s9 = scalar_select 0, %s8, %s6
  $region1: #{tpu_custom_call.1} parent=0
    #allocation2 [shape = 'u8[16384]{0}', space=vmem, size = 0x4000, scoped, tag = 'output window, operand 0']
    #allocation3 [shape = 's32[2]{0}', space=sflag, size = 0x8, scoped, tag = 'scoped memory for tpu_custom_call.1']
    %10 = vsyncpa [#allocation3], 0
    %s11 = scalar_lea.sflag [#allocation3], 1
    %12 = vsyncpa %s11, 0
    loop: start=0, step=1, limit=4
    $region2: #{tpu_custom_call.1} parent=1 // loop_pre_header
      _
    $region3: #{tpu_custom_call.1} parent=1 // loop_header
      %s14 = sphi 0, %s18
      %p15 = scmp.ge.s32.totalorder %s14, 4
      %s21 = sphi 0, %s33
      %s22 = sphi 0, %s29
      %s23 = sphi 0, %s21
      %s24 = sphi 0, %s22
      %s25 = sphi 0, %s23
      %s26 = sphi 0, %s24
      %s38 = sphi 0, %s40
      %s41 = sphi 0, %s38
      %s42 = sphi 0, %s41
      %s58 = sphi 0, %s42
      %s62 = sphi 0, %s62
      %s64 = sphi 0, %s62
      %s65 = sphi 0, %s64
      %s79 = sphi 0, %s65
      %s83 = sphi 0, %s83
      %s85 = sphi 0, %s83
      %s86 = sphi 0, %s85
      %s100 = sphi 0, %s86
      %s104 = sphi 0, %s104
      %s106 = sphi 0, %s104
      %s107 = sphi 0, %s106
      %s121 = sphi 0, %s107
      %s125 = sphi 0, %s125
      %s127 = sphi 0, %s125
      %s128 = sphi 0, %s127
      %s142 = sphi 0, %s128
      %s150 = sphi 0, %s152
      %s153 = sphi 0, %s150
      %s154 = sphi 0, %s153
      %s170 = sphi 0, %s154
    $region4: #{tpu_custom_call.1} parent=1 // loop_header_branch
      %17 = sbr.rel (%p15) target = $region8
    $region5: #{tpu_custom_call.1} parent=1 // loop_body
      %s19 = ssub.s32 %s14, 1
      %s20 = ssub.s32 %s14, 2
      %s27 = sadd.s32 1, %s22
      %p28 = scmp.ge.s32.totalorder %s27, 1
      %s29 = scalar_select %p28, 0, %s27
      %s30 = sadd.s32 1, %s21
      %s31 = scalar_select %p28, %s30, %s21
      %p32 = scmp.ge.s32.totalorder %s31, 2
      %s33 = scalar_select %p32, 0, %s31
      %s34 = ssub.s32 %s21, %s33
      %s35 = ssub.s32 %s22, %s29
      %s36 = sor.u32 %s34, %s35
      %p37 = scmp.eq.s32.totalorder %s36, 0
      %s39 = sadd.s32 %s38, 1
      %s40 = scalar_select %p37, %s38, %s39
      %p43 = pneg %p37
      %p44 = scmp.eq.s32.totalorder %s14, 1
      %p45 = por %p43, %p44
      %p46 = scmp.ne.s32.totalorder %s38, %s41
      %p47 = scmp.eq.s32.totalorder %s14, 0
      %p48 = por %p46, %p47
      %p49 = scmp.ne.s32.totalorder %s38, %s41
      %p50 = scmp.eq.s32.totalorder %s19, 1
      %p51 = por %p49, %p50
      %p52 = scmp.ne.s32.totalorder %s41, %s42
      %p53 = scmp.eq.s32.totalorder %s19, 0
      %p54 = por %p52, %p53
      %p55 = scmp.ne.s32.totalorder %s41, %s42
      %p56 = scmp.eq.s32.totalorder %s20, 1
      %p57 = por %p55, %p56
      %p59 = scmp.ne.s32.totalorder %s42, %s58
      %p60 = scmp.eq.s32.totalorder %s20, 0
      %p61 = por %p59, %p60
      %s63 = sadd.s32 %s62, 1
      %p66 = scmp.eq.s32.totalorder %s14, 1
      %p67 = scmp.ne.s32.totalorder %s62, %s64
      %p68 = scmp.eq.s32.totalorder %s14, 0
      %p69 = por %p67, %p68
      %p70 = scmp.ne.s32.totalorder %s62, %s64
      %p71 = scmp.eq.s32.totalorder %s19, 1
      %p72 = por %p70, %p71
      %p73 = scmp.ne.s32.totalorder %s64, %s65
      %p74 = scmp.eq.s32.totalorder %s19, 0
      %p75 = por %p73, %p74
      %p76 = scmp.ne.s32.totalorder %s64, %s65
      %p77 = scmp.eq.s32.totalorder %s20, 1
      %p78 = por %p76, %p77
      %p80 = scmp.ne.s32.totalorder %s65, %s79
      %p81 = scmp.eq.s32.totalorder %s20, 0
      %p82 = por %p80, %p81
      %s84 = sadd.s32 %s83, 1
      %p87 = scmp.eq.s32.totalorder %s14, 1
      %p88 = scmp.ne.s32.totalorder %s83, %s85
      %p89 = scmp.eq.s32.totalorder %s14, 0
      %p90 = por %p88, %p89
      %p91 = scmp.ne.s32.totalorder %s83, %s85
      %p92 = scmp.eq.s32.totalorder %s19, 1
      %p93 = por %p91, %p92
      %p94 = scmp.ne.s32.totalorder %s85, %s86
      %p95 = scmp.eq.s32.totalorder %s19, 0
      %p96 = por %p94, %p95
      %p97 = scmp.ne.s32.totalorder %s85, %s86
      %p98 = scmp.eq.s32.totalorder %s20, 1
      %p99 = por %p97, %p98
      %p101 = scmp.ne.s32.totalorder %s86, %s100
      %p102 = scmp.eq.s32.totalorder %s20, 0
      %p103 = por %p101, %p102
      %s105 = sadd.s32 %s104, 1
      %p108 = scmp.eq.s32.totalorder %s14, 1
      %p109 = scmp.ne.s32.totalorder %s104, %s106
      %p110 = scmp.eq.s32.totalorder %s14, 0
      %p111 = por %p109, %p110
      %p112 = scmp.ne.s32.totalorder %s104, %s106
      %p113 = scmp.eq.s32.totalorder %s19, 1
      %p114 = por %p112, %p113
      %p115 = scmp.ne.s32.totalorder %s106, %s107
      %p116 = scmp.eq.s32.totalorder %s19, 0
      %p117 = por %p115, %p116
      %p118 = scmp.ne.s32.totalorder %s106, %s107
      %p119 = scmp.eq.s32.totalorder %s20, 1
      %p120 = por %p118, %p119
      %p122 = scmp.ne.s32.totalorder %s107, %s121
      %p123 = scmp.eq.s32.totalorder %s20, 0
      %p124 = por %p122, %p123
      %s126 = sadd.s32 %s125, 1
      %p129 = scmp.eq.s32.totalorder %s14, 1
      %p130 = scmp.ne.s32.totalorder %s125, %s127
      %p131 = scmp.eq.s32.totalorder %s14, 0
      %p132 = por %p130, %p131
      %p133 = scmp.ne.s32.totalorder %s125, %s127
      %p134 = scmp.eq.s32.totalorder %s19, 1
      %p135 = por %p133, %p134
      %p136 = scmp.ne.s32.totalorder %s127, %s128
      %p137 = scmp.eq.s32.totalorder %s19, 0
      %p138 = por %p136, %p137
      %p139 = scmp.ne.s32.totalorder %s127, %s128
      %p140 = scmp.eq.s32.totalorder %s20, 1
      %p141 = por %p139, %p140
      %p143 = scmp.ne.s32.totalorder %s128, %s142
      %p144 = scmp.eq.s32.totalorder %s20, 0
      %p145 = por %p143, %p144
      %s146 = ssub.s32 %s21, %s33
      %s147 = ssub.s32 %s22, %s29
      %s148 = sor.u32 %s146, %s147
      %p149 = scmp.eq.s32.totalorder %s148, 0
      %s151 = sadd.s32 %s150, 1
      %s152 = scalar_select %p149, %s150, %s151
      %p155 = pneg %p149
      %p156 = scmp.eq.s32.totalorder %s14, 1
      %p157 = por %p155, %p156
      %p158 = scmp.ne.s32.totalorder %s150, %s153
      %p159 = scmp.eq.s32.totalorder %s14, 0
      %p160 = por %p158, %p159
      %p161 = scmp.ne.s32.totalorder %s150, %s153
      %p162 = scmp.eq.s32.totalorder %s19, 1
      %p163 = por %p161, %p162
      %p164 = scmp.ne.s32.totalorder %s153, %s154
      %p165 = scmp.eq.s32.totalorder %s19, 0
      %p166 = por %p164, %p165
      %p167 = scmp.ne.s32.totalorder %s153, %s154
      %p168 = scmp.eq.s32.totalorder %s20, 1
      %p169 = por %p167, %p168
      %p171 = scmp.ne.s32.totalorder %s154, %s170
      %p172 = scmp.eq.s32.totalorder %s20, 0
      %p173 = por %p171, %p172
      %p174 = scmp.le.s32.totalorder 1, %s14
      %p175 = scmp.lt.s32.totalorder %s14, 3
      %p176 = pnand %p174, %p175
      %p177 = pneg %p176
      // Predicated region
      $region9: #{tpu_custom_call.1} parent=5 // pred_check
        _
      $region10: #{tpu_custom_call.1} parent=5 // pred_check_branch
        %179 = sbr.rel (%p176) target = $region12
      $region11: #{tpu_custom_call.1} parent=5 // pred_region
        %s180 = ssub.s32 %s14, 1
        // Predicated region
        $region13: #{tpu_custom_call.1} parent=11 // pred_check
          %p181 = pneg %p75
        $region14: #{tpu_custom_call.1} parent=11 // pred_check_branch
          %183 = sbr.rel (%p181) target = $region16
        $region15: #{tpu_custom_call.1} parent=11 // pred_region
          _
        $region16: #{tpu_custom_call.1} parent=11 // pred_fallthru
          _
        // Predicated region
        $region17: #{tpu_custom_call.1} parent=11 // pred_check
          %p184 = pneg %p96
        $region18: #{tpu_custom_call.1} parent=11 // pred_check_branch
          %186 = sbr.rel (%p184) target = $region20
        $region19: #{tpu_custom_call.1} parent=11 // pred_region
          _
        $region20: #{tpu_custom_call.1} parent=11 // pred_fallthru
          _
        // Predicated region
        $region21: #{tpu_custom_call.1} parent=11 // pred_check
          %p187 = pneg %p117
        $region22: #{tpu_custom_call.1} parent=11 // pred_check_branch
          %189 = sbr.rel (%p187) target = $region24
        $region23: #{tpu_custom_call.1} parent=11 // pred_region
          _
        $region24: #{tpu_custom_call.1} parent=11 // pred_fallthru
          _
        // Predicated region
        $region25: #{tpu_custom_call.1} parent=11 // pred_check
          %p190 = pneg %p138
        $region26: #{tpu_custom_call.1} parent=11 // pred_check_branch
          %192 = sbr.rel (%p190) target = $region28
        $region27: #{tpu_custom_call.1} parent=11 // pred_region
          _
        $region28: #{tpu_custom_call.1} parent=11 // pred_fallthru
          _
      $region12: #{tpu_custom_call.1} parent=5 // pred_fallthru
        _
      %p193 = scmp.lt.s32.totalorder %s14, 2
      // Predicated region
      $region29: #{tpu_custom_call.1} parent=5 // pred_check
        %p194 = pneg %p193
      $region30: #{tpu_custom_call.1} parent=5 // pred_check_branch
        %196 = sbr.rel (%p194) target = $region32
      $region31: #{tpu_custom_call.1} parent=5 // pred_region
        // Predicated region
        $region33: #{tpu_custom_call.1} parent=31 // pred_check
          %p197 = pneg %p48
        $region34: #{tpu_custom_call.1} parent=31 // pred_check_branch
          %199 = sbr.rel (%p197) target = $region36
        $region35: #{tpu_custom_call.1} parent=31 // pred_region
          %p200 = scmp.lt.s32.totalorder %s21, 1
          %s201 = scalar_select %p200, %s21, 1
          %p202 = scmp.lt.s32.totalorder %s22, 0
          %s203 = scalar_select %p202, %s22, 0
          %s204 = sadd.s32 %s203, %s201
          %s205 = smul.addr %s204, 8
          %s206 = scalar_lea.vmem %s0, %s205
        $region36: #{tpu_custom_call.1} parent=31 // pred_fallthru
          _
      $region32: #{tpu_custom_call.1} parent=5 // pred_fallthru
        _
      %p207 = scmp.le.s32.totalorder 1, %s14
      %p208 = scmp.lt.s32.totalorder %s14, 3
      %p209 = pnand %p207, %p208
      %p210 = pneg %p209
      // Predicated region
      $region37: #{tpu_custom_call.1} parent=5 // pred_check
        _
      $region38: #{tpu_custom_call.1} parent=5 // pred_check_branch
        %212 = sbr.rel (%p209) target = $region40
      $region39: #{tpu_custom_call.1} parent=5 // pred_region
        %s213 = ssub.s32 %s14, 1
        %p214 = scmp.lt.s32.totalorder %s23, 1
        %s215 = scalar_select %p214, %s23, 1
        %p216 = scmp.lt.s32.totalorder %s24, 0
        %s217 = scalar_select %p216, %s24, 0
        %s218 = sadd.s32 %s217, %s215
        %s219 = smul.addr %s218, 8
        %s220 = scalar_lea.vmem %s0, %s219
        %p221 = pneg %p54
        %p222 = pneg %p51
        %p223 = pneg %p75
        %p224 = pneg %p72
        %p225 = pneg %p96
        %p226 = pneg %p93
        %p227 = pneg %p117
        %p228 = pneg %p114
        %p229 = pneg %p138
        %p230 = pneg %p135
        %p231 = pneg %p166
        %p232 = pneg %p163
        %s233 = sand.u32 %s153, 1
        %s234 = scalar_lea.sflag [#allocation3], %s233
        %s235 = sand.u32 %s153, 1
        %s236 = smul.addr %s235, 16
        %s237 = scalar_lea.vmem [#allocation2], %s236
        %p238 = scmp.lt.s32.totalorder %s23, 1
        %s239 = scalar_select %p238, %s23, 1
        %p240 = scmp.lt.s32.totalorder %s24, 0
        %s241 = scalar_select %p240, %s24, 0
        %s242 = sadd.s32 %s241, %s239
        %s243 = smul.addr %s242, 8
        %s244 = scalar_lea.vmem %s0, %s243
        %v245 = vld [vmem:[%s244] sm:$0xff]
        %v246 = vld [vmem:[%s1] sm:$0xff]
        %v247 = vld [vmem:[%s1 + $0x8] sm:$0xff]
        %v248 = vld [vmem:[%s1 + $0x10] sm:$0xff]
        %v249 = vld [vmem:[%s1 + $0x18] sm:$0xff]
        %v250 = vld [vmem:[%s3] sm:$0xff]
        %v251 = vld [vmem:[%s3 + $0x8] sm:$0xff]
        %v252 = vld [vmem:[%s3 + $0x10] sm:$0xff]
        %v253 = vld [vmem:[%s3 + $0x18] sm:$0xff]
        %v254 = vld [vmem:[%s2] sm:$0x1]
        %v256 = vlaneseq
        %v257 = vshrl.u32 %v256, 7
        %v258 = vsub.s32 0, %v257
        %v259 = vrot.slane %v254, %v258
        %v261 = vld [vmem:[%s4] sm:$0x1]
        %v263 = vlaneseq
        %v264 = vshrl.u32 %v263, 7
        %v265 = vsub.s32 0, %v264
        %v266 = vrot.slane %v261, %v265
        %vm268 = vcmask 261120
        %v270 = vsel %vm268, %v245, 0
        %272 = vmatprep.subr.mxu0 0.0
        %273 = vmatpush1.msra.mxu0 %v246
        %274 = vmatprep.subr.mxu0 0.0
        %275 = vmatpush1.msra.mxu0 %v247
        %276 = vmatprep.subr.mxu0 0.0
        %277 = vmatpush1.msra.mxu0 %v248
        %278 = vmatprep.subr.mxu0 0.0
        %279 = vmatpush1.msra.mxu0 %v249
        %280 = vmatprep.subr.mxu0 0.0
        %281 = vmatpush1.msra.mxu0 0.0
        %282 = vmatprep.subr.mxu0 0.0
        %283 = vmatpush1.msra.mxu0 0.0
        %284 = vmatprep.subr.mxu0 0.0
        %285 = vmatpush1.msra.mxu0 0.0
        %286 = vmatprep.subr.mxu0 0.0
        %287 = vmatpush1.msra.mxu0 0.0
        %288 = vmatprep.subr.mxu0 0.0
        %289 = vmatpush1.msra.mxu0 0.0
        %290 = vmatprep.subr.mxu0 0.0
        %291 = vmatpush1.msra.mxu0 0.0
        %292 = vmatprep.subr.mxu0 0.0
        %293 = vmatpush1.msra.mxu0 0.0
        %294 = vmatprep.subr.mxu0 0.0
        %295 = vmatpush1.msra.mxu0 0.0
        %296 = vmatprep.subr.mxu0 0.0
        %297 = vmatpush1.msra.mxu0 0.0
        %298 = vmatprep.subr.mxu0 0.0
        %299 = vmatpush1.msra.mxu0 0.0
        %300 = vmatprep.subr.mxu0 0.0
        %301 = vmatpush1.msra.mxu0 0.0
        %302 = vmatprep.subr.mxu0 0.0
        %303 = vmatpush1.msra.mxu0 0.0
        %304 = vmatprep.subr.mxu0 0.0
        %305 = vmatpush1.msra.mxu0 0.0
        %306 = vmatprep.subr.mxu0 0.0
        %307 = vmatpush1.msra.mxu0 0.0
        %308 = vmatprep.subr.mxu0 0.0
        %309 = vmatpush1.msra.mxu0 0.0
        %310 = vmatprep.subr.mxu0 0.0
        %311 = vmatpush1.msra.mxu0 0.0
        %312 = vmatprep.subr.mxu0 0.0
        %313 = vmatpush1.msra.mxu0 0.0
        %314 = vmatprep.subr.mxu0 0.0
        %315 = vmatpush1.msra.mxu0 0.0
        %316 = vmatprep.subr.mxu0 0.0
        %317 = vmatpush1.msra.mxu0 0.0
        %318 = vmatprep.subr.mxu0 0.0
        %319 = vmatpush1.msra.mxu0 0.0
        %320 = vmatprep.subr.mxu0 0.0
        %321 = vmatpush1.msra.mxu0 0.0
        %322 = vmatprep.subr.mxu0 0.0
        %323 = vmatpush1.msra.mxu0 0.0
        %324 = vmatprep.subr.mxu0 0.0
        %325 = vmatpush1.msra.mxu0 0.0
        %326 = vmatprep.subr.mxu0 0.0
        %327 = vmatpush1.msra.mxu0 0.0
        %328 = vmatprep.subr.mxu0 0.0
        %329 = vmatpush1.msra.mxu0 0.0
        %330 = vmatprep.subr.mxu0 0.0
        %331 = vmatpush1.msra.mxu0 0.0
        %332 = vmatprep.subr.mxu0 0.0
        %333 = vmatpush1.msra.mxu0 0.0
        %334 = vmatprep.subr.mxu0 0.0
        %335 = vmatpush1.msra.mxu0 0.0
        %336 = vmatprep.mubr.f32.mxu0 0.0
        %337 = vmatmul.mubr.f32.gmra.mrb[0].mxu0 %v270
        %v338 = vpop.f32.mrb[0].mxu0
        %v339 = vadd.f32 %v259, %v338
        %v340 = vpop.f32.mrb[0].mxu0
        %341 = vdwg.mxu0
        %v342 = vmax.f32 %v339, 0.0
        %v344 = vsel %vm268, %v342, 0
        %346 = vmatprep.subr.mxu0 0.0
        %347 = vmatpush1.msra.mxu0 %v246
        %348 = vmatprep.subr.mxu0 0.0
        %349 = vmatpush1.msra.mxu0 %v247
        %350 = vmatprep.subr.mxu0 0.0
        %351 = vmatpush1.msra.mxu0 %v248
        %352 = vmatprep.subr.mxu0 0.0
        %353 = vmatpush1.msra.mxu0 %v249
        %354 = vmatprep.subr.mxu0 0.0
        %355 = vmatpush1.msra.mxu0 0.0
        %356 = vmatprep.subr.mxu0 0.0
        %357 = vmatpush1.msra.mxu0 0.0
        %358 = vmatprep.subr.mxu0 0.0
        %359 = vmatpush1.msra.mxu0 0.0
        %360 = vmatprep.subr.mxu0 0.0
        %361 = vmatpush1.msra.mxu0 0.0
        %362 = vmatprep.subr.mxu0 0.0
        %363 = vmatpush1.msra.mxu0 0.0
        %364 = vmatprep.subr.mxu0 0.0
        %365 = vmatpush1.msra.mxu0 0.0
        %366 = vmatprep.subr.mxu0 0.0
        %367 = vmatpush1.msra.mxu0 0.0
        %368 = vmatprep.subr.mxu0 0.0
        %369 = vmatpush1.msra.mxu0 0.0
        %370 = vmatprep.subr.mxu0 0.0
        %371 = vmatpush1.msra.mxu0 0.0
        %372 = vmatprep.subr.mxu0 0.0
        %373 = vmatpush1.msra.mxu0 0.0
        %374 = vmatprep.subr.mxu0 0.0
        %375 = vmatpush1.msra.mxu0 0.0
        %376 = vmatprep.subr.mxu0 0.0
        %377 = vmatpush1.msra.mxu0 0.0
        %378 = vmatprep.subr.mxu0 0.0
        %379 = vmatpush1.msra.mxu0 0.0
        %380 = vmatprep.subr.mxu0 0.0
        %381 = vmatpush1.msra.mxu0 0.0
        %382 = vmatprep.subr.mxu0 0.0
        %383 = vmatpush1.msra.mxu0 0.0
        %384 = vmatprep.subr.mxu0 0.0
        %385 = vmatpush1.msra.mxu0 0.0
        %386 = vmatprep.subr.mxu0 0.0
        %387 = vmatpush1.msra.mxu0 0.0
        %388 = vmatprep.subr.mxu0 0.0
        %389 = vmatpush1.msra.mxu0 0.0
        %390 = vmatprep.subr.mxu0 0.0
        %391 = vmatpush1.msra.mxu0 0.0
        %392 = vmatprep.subr.mxu0 0.0
        %393 = vmatpush1.msra.mxu0 0.0
        %394 = vmatprep.subr.mxu0 0.0
        %395 = vmatpush1.msra.mxu0 0.0
        %396 = vmatprep.subr.mxu0 0.0
        %397 = vmatpush1.msra.mxu0 0.0
        %398 = vmatprep.subr.mxu0 0.0
        %399 = vmatpush1.msra.mxu0 0.0
        %400 = vmatprep.subr.mxu0 0.0
        %401 = vmatpush1.msra.mxu0 0.0
        %402 = vmatprep.subr.mxu0 0.0
        %403 = vmatpush1.msra.mxu0 0.0
        %404 = vmatprep.subr.mxu0 0.0
        %405 = vmatpush1.msra.mxu0 0.0
        %406 = vmatprep.subr.mxu0 0.0
        %407 = vmatpush1.msra.mxu0 0.0
        %408 = vmatprep.subr.mxu0 0.0
        %409 = vmatpush1.msra.mxu0 0.0
        %410 = vmatprep.mubr.f32.mxu0 0.0
        %411 = vmatmul.mubr.f32.gmra.mrb[0].mxu0 %v344
        %v412 = vpop.f32.mrb[0].mxu0
        %v413 = vadd.f32 %v259, %v412
        %v414 = vpop.f32.mrb[0].mxu0
        %415 = vdwg.mxu0
        %v416 = vmax.f32 %v413, 0.0
        %v418 = vsel %vm268, %v416, 0
        %420 = vmatprep.subr.mxu0 0.0
        %421 = vmatpush1.msra.mxu0 %v246
        %422 = vmatprep.subr.mxu0 0.0
        %423 = vmatpush1.msra.mxu0 %v247
        %424 = vmatprep.subr.mxu0 0.0
        %425 = vmatpush1.msra.mxu0 %v248
        %426 = vmatprep.subr.mxu0 0.0
        %427 = vmatpush1.msra.mxu0 %v249
        %428 = vmatprep.subr.mxu0 0.0
        %429 = vmatpush1.msra.mxu0 0.0
        %430 = vmatprep.subr.mxu0 0.0
        %431 = vmatpush1.msra.mxu0 0.0
        %432 = vmatprep.subr.mxu0 0.0
        %433 = vmatpush1.msra.mxu0 0.0
        %434 = vmatprep.subr.mxu0 0.0
        %435 = vmatpush1.msra.mxu0 0.0
        %436 = vmatprep.subr.mxu0 0.0
        %437 = vmatpush1.msra.mxu0 0.0
        %438 = vmatprep.subr.mxu0 0.0
        %439 = vmatpush1.msra.mxu0 0.0
        %440 = vmatprep.subr.mxu0 0.0
        %441 = vmatpush1.msra.mxu0 0.0
        %442 = vmatprep.subr.mxu0 0.0
        %443 = vmatpush1.msra.mxu0 0.0
        %444 = vmatprep.subr.mxu0 0.0
        %445 = vmatpush1.msra.mxu0 0.0
        %446 = vmatprep.subr.mxu0 0.0
        %447 = vmatpush1.msra.mxu0 0.0
        %448 = vmatprep.subr.mxu0 0.0
        %449 = vmatpush1.msra.mxu0 0.0
        %450 = vmatprep.subr.mxu0 0.0
        %451 = vmatpush1.msra.mxu0 0.0
        %452 = vmatprep.subr.mxu0 0.0
        %453 = vmatpush1.msra.mxu0 0.0
        %454 = vmatprep.subr.mxu0 0.0
        %455 = vmatpush1.msra.mxu0 0.0
        %456 = vmatprep.subr.mxu0 0.0
        %457 = vmatpush1.msra.mxu0 0.0
        %458 = vmatprep.subr.mxu0 0.0
        %459 = vmatpush1.msra.mxu0 0.0
        %460 = vmatprep.subr.mxu0 0.0
        %461 = vmatpush1.msra.mxu0 0.0
        %462 = vmatprep.subr.mxu0 0.0
        %463 = vmatpush1.msra.mxu0 0.0
        %464 = vmatprep.subr.mxu0 0.0
        %465 = vmatpush1.msra.mxu0 0.0
        %466 = vmatprep.subr.mxu0 0.0
        %467 = vmatpush1.msra.mxu0 0.0
        %468 = vmatprep.subr.mxu0 0.0
        %469 = vmatpush1.msra.mxu0 0.0
        %470 = vmatprep.subr.mxu0 0.0
        %471 = vmatpush1.msra.mxu0 0.0
        %472 = vmatprep.subr.mxu0 0.0
        %473 = vmatpush1.msra.mxu0 0.0
        %474 = vmatprep.subr.mxu0 0.0
        %475 = vmatpush1.msra.mxu0 0.0
        %476 = vmatprep.subr.mxu0 0.0
        %477 = vmatpush1.msra.mxu0 0.0
        %478 = vmatprep.subr.mxu0 0.0
        %479 = vmatpush1.msra.mxu0 0.0
        %480 = vmatprep.subr.mxu0 0.0
        %481 = vmatpush1.msra.mxu0 0.0
        %482 = vmatprep.subr.mxu0 0.0
        %483 = vmatpush1.msra.mxu0 0.0
        %484 = vmatprep.mubr.f32.mxu0 0.0
        %485 = vmatmul.mubr.f32.gmra.mrb[0].mxu0 %v418
        %v486 = vpop.f32.mrb[0].mxu0
        %v487 = vadd.f32 %v259, %v486
        %v488 = vpop.f32.mrb[0].mxu0
        %489 = vdwg.mxu0
        %v490 = vmax.f32 %v487, 0.0
        %v492 = vsel %vm268, %v490, 0
        %494 = vmatprep.subr.mxu0 0.0
        %495 = vmatpush1.msra.mxu0 %v250
        %496 = vmatprep.subr.mxu0 0.0
        %497 = vmatpush1.msra.mxu0 %v251
        %498 = vmatprep.subr.mxu0 0.0
        %499 = vmatpush1.msra.mxu0 %v252
        %500 = vmatprep.subr.mxu0 0.0
        %501 = vmatpush1.msra.mxu0 %v253
        %502 = vmatprep.subr.mxu0 0.0
        %503 = vmatpush1.msra.mxu0 0.0
        %504 = vmatprep.subr.mxu0 0.0
        %505 = vmatpush1.msra.mxu0 0.0
        %506 = vmatprep.subr.mxu0 0.0
        %507 = vmatpush1.msra.mxu0 0.0
        %508 = vmatprep.subr.mxu0 0.0
        %509 = vmatpush1.msra.mxu0 0.0
        %510 = vmatprep.subr.mxu0 0.0
        %511 = vmatpush1.msra.mxu0 0.0
        %512 = vmatprep.subr.mxu0 0.0
        %513 = vmatpush1.msra.mxu0 0.0
        %514 = vmatprep.subr.mxu0 0.0
        %515 = vmatpush1.msra.mxu0 0.0
        %516 = vmatprep.subr.mxu0 0.0
        %517 = vmatpush1.msra.mxu0 0.0
        %518 = vmatprep.subr.mxu0 0.0
        %519 = vmatpush1.msra.mxu0 0.0
        %520 = vmatprep.subr.mxu0 0.0
        %521 = vmatpush1.msra.mxu0 0.0
        %522 = vmatprep.subr.mxu0 0.0
        %523 = vmatpush1.msra.mxu0 0.0
        %524 = vmatprep.subr.mxu0 0.0
        %525 = vmatpush1.msra.mxu0 0.0
        %526 = vmatprep.subr.mxu0 0.0
        %527 = vmatpush1.msra.mxu0 0.0
        %528 = vmatprep.subr.mxu0 0.0
        %529 = vmatpush1.msra.mxu0 0.0
        %530 = vmatprep.subr.mxu0 0.0
        %531 = vmatpush1.msra.mxu0 0.0
        %532 = vmatprep.subr.mxu0 0.0
        %533 = vmatpush1.msra.mxu0 0.0
        %534 = vmatprep.subr.mxu0 0.0
        %535 = vmatpush1.msra.mxu0 0.0
        %536 = vmatprep.subr.mxu0 0.0
        %537 = vmatpush1.msra.mxu0 0.0
        %538 = vmatprep.subr.mxu0 0.0
        %539 = vmatpush1.msra.mxu0 0.0
        %540 = vmatprep.subr.mxu0 0.0
        %541 = vmatpush1.msra.mxu0 0.0
        %542 = vmatprep.subr.mxu0 0.0
        %543 = vmatpush1.msra.mxu0 0.0
        %544 = vmatprep.subr.mxu0 0.0
        %545 = vmatpush1.msra.mxu0 0.0
        %546 = vmatprep.subr.mxu0 0.0
        %547 = vmatpush1.msra.mxu0 0.0
        %548 = vmatprep.subr.mxu0 0.0
        %549 = vmatpush1.msra.mxu0 0.0
        %550 = vmatprep.subr.mxu0 0.0
        %551 = vmatpush1.msra.mxu0 0.0
        %552 = vmatprep.subr.mxu0 0.0
        %553 = vmatpush1.msra.mxu0 0.0
        %554 = vmatprep.subr.mxu0 0.0
        %555 = vmatpush1.msra.mxu0 0.0
        %556 = vmatprep.subr.mxu0 0.0
        %557 = vmatpush1.msra.mxu0 0.0
        %558 = vmatprep.mubr.f32.mxu0 0.0
        %559 = vmatmul.mubr.f32.gmra.mrb[0].mxu0 %v270
        %v560 = vpop.f32.mrb[0].mxu0
        %v561 = vadd.f32 %v266, %v560
        %v562 = vpop.f32.mrb[0].mxu0
        %563 = vmatprep.mubr.f32.mxu0 0.0
        %564 = vmatmul.mubr.f32.gmra.mrb[0].mxu0 %v492
        %v565 = vpop.f32.mrb[0].mxu0
        %v566 = vadd.f32 %v266, %v565
        %v567 = vpop.f32.mrb[0].mxu0
        %568 = vdwg.mxu0
        %vm569 = vcmask 130048
        %570 = vst.msk [vmem:[%s237] sm:$0xff] %vm569, %v561
        %s571 = scalar_lea.vmem %s237, 8 [#allocation2]
        %572 = vst.msk [vmem:[%s571] sm:$0xff] %vm569, %v566
        %s573 = sand.u32 %s153, 1
        %s574 = scalar_lea.sflag [#allocation3], %s573
        %s575 = sand.u32 %s153, 1
        %s576 = smul.addr %s575, 16
        %s577 = scalar_lea.vmem [#allocation2], %s576
        // Predicated region
        $region41: #{tpu_custom_call.1} parent=39 // pred_check
          %p578 = pneg %p163
        $region42: #{tpu_custom_call.1} parent=39 // pred_check_branch
          %580 = sbr.rel (%p578) target = $region44
        $region43: #{tpu_custom_call.1} parent=39 // pred_region
          %s582 = ssub.s32 256, 256
          %583 = vsyncadd %s574, %s582
          %s584 = smul.addr %s23, 2
          %s585 = sadd.s32 %s24, %s584
          %s586 = smul.addr %s585, 128
          %s587 = scalar_lea.hbm %s5, %s586
          %s588 = sshll.u32 %s577, 4
          %s589 = int_to_ptr.vmem [resolvable:$true] %s588
          %594 = dma.vmem_to_hbm [thread:$0]  %s589, 256, %s587, %s574, 128, 128, 8
        $region44: #{tpu_custom_call.1} parent=39 // pred_fallthru
          _
      $region40: #{tpu_custom_call.1} parent=5 // pred_fallthru
        _
      %p595 = scmp.le.s32.totalorder 2, %s14
      // Predicated region
      $region45: #{tpu_custom_call.1} parent=5 // pred_check
        %p596 = pneg %p595
      $region46: #{tpu_custom_call.1} parent=5 // pred_check_branch
        %598 = sbr.rel (%p596) target = $region48
      $region47: #{tpu_custom_call.1} parent=5 // pred_region
        %s599 = ssub.s32 %s14, 2
        // Predicated region
        $region49: #{tpu_custom_call.1} parent=47 // pred_check
          %p600 = pneg %p169
        $region50: #{tpu_custom_call.1} parent=47 // pred_check_branch
          %602 = sbr.rel (%p600) target = $region52
        $region51: #{tpu_custom_call.1} parent=47 // pred_region
          %s603 = sand.u32 %s154, 1
          %s604 = scalar_lea.sflag [#allocation3], %s603
          %s605 = sand.u32 %s154, 1
          %s606 = smul.addr %s605, 16
          %s607 = scalar_lea.vmem [#allocation2], %s606
          %608 = dma.done %s604, 256
        $region52: #{tpu_custom_call.1} parent=47 // pred_fallthru
          _
      $region48: #{tpu_custom_call.1} parent=5 // pred_fallthru
        _
    $region6: #{tpu_custom_call.1} parent=1 // loop_footer
      %s18 = sadd.s32 1, %s14
    $region7: #{tpu_custom_call.1} parent=1 // loop_footer_branch
      %13 = sbr.rel target = $region3
    $region8: #{tpu_custom_call.1} parent=1 // loop_exit
      _
    %609 = vsyncpa [#allocation3], 1
    %s610 = scalar_lea.sflag [#allocation3], 1
    %611 = vsyncpa %s610, 1

</llo_original>
